<compile_context>
chip_gen: v7x
topology: tpu7x:2x2x1
jax: 0.10.0
libtpu: 0.0.40
codegen_flags: <defaults>
</compile_context>

<pallas_src>
import functools

import jax
import jax.numpy as jnp
from jax import lax
from jax.experimental import pallas as pl
from jax.experimental.pallas import tpu as pltpu


def _round_up(x, m):
    return (x + m - 1) // m * m


def _vmem_capacity_bytes():
    """Physical per-TensorCore VMEM; conservative 64 MiB (v7x) fallback."""
    try:
        info = pltpu.get_tpu_info()
        cap = getattr(info, "vmem_capacity_bytes", None)
        if cap:
            return int(cap)
    except Exception:
        pass
    return 64 * 1024 * 1024


def _attention_local_kernel(max_len, local_window,
                            p_ref,                       # (TB, 1)   int32
                            enc_ref,                     # (TB, Lp, Hp) compute dtype
                            dec_ref,                     # (TB, Hp)     compute dtype
                            wdec_ref,                    # (Hp, 2Hp) [W_local^T | W_out_dec^T]
                            watt_ref,                    # (Hp, Hp)  W_out_att^T
                            out_ref,                     # (TB, Hp)  f32
                            align_ref):                  # (TB, Lp)  f32
    cd = enc_ref.dtype
    enc = enc_ref[...]                                   # (TB, Lp, Hp), native dtype
    dec = dec_ref[...]                                   # (TB, Hp)
    hp = dec.shape[-1]

    # Fused decoder-LHS matmul: [lin_dec | out_dec] = dec @ [W_local^T | W_out_dec^T]
    fused = jnp.dot(dec, wdec_ref[...],
                    preferred_element_type=jnp.float32)              # (TB, 2Hp) f32
    lin_dec = fused[:, :hp]                                          # (TB, Hp)
    out_dec = fused[:, hp:]                                          # (TB, Hp)

    # scores[b, l] = sum_h lin_dec[b, h] * enc[b, l, h]  -- batched MXU matmul
    scores = jnp.einsum('bqh,blh->bql',
                        lin_dec.astype(cd)[:, None, :], enc,
                        preferred_element_type=jnp.float32)[:, 0, :]  # (TB, Lp) f32

    # local window [left, right] around p_t' = max_len - p_t, clipped to [0, max_len]
    pt = max_len - p_ref[...]                                        # (TB, 1) int32
    left = jnp.maximum(pt - local_window, 0)
    right = jnp.minimum(pt + local_window, max_len)

    tb, lp = scores.shape
    idx = lax.broadcasted_iota(jnp.int32, (tb, lp), 1)                # (TB, Lp)
    # extra `idx >= max_len` term masks the zero-padded sequence positions
    mask = (idx < left) | (idx > right) | (idx >= max_len)
    scores = jnp.where(mask, -jnp.inf, scores)

    # softmax over the sequence axis (align_fn); reciprocal on the EUP slot
    m = jnp.max(scores, axis=-1, keepdims=True)
    e = jnp.exp(scores - m)
    inv_sum = pl.reciprocal(jnp.sum(e, axis=-1, keepdims=True), approx=True)
    align = e * inv_sum                                               # (TB, Lp) f32

    # gaussian re-weighting around p_t' (square in f32 to avoid i32 overflow)
    denom = 2.0 * (local_window / 2.0) ** 2
    diff = (idx - pt).astype(jnp.float32)
    gauss = jnp.exp(-jnp.minimum(diff * diff, 100.0) / denom)
    att_score = align * gauss                                         # (TB, Lp) f32

    # attention_vector[b, h] = sum_l att_score[b, l] * enc[b, l, h]  -- batched MXU matmul
    attn_vec = jnp.einsum('bql,blh->bqh',
                          att_score.astype(cd)[:, None, :], enc,
                          preferred_element_type=jnp.float32)[:, 0, :]  # (TB, Hp) f32

    # out_linear(concat(dec, attn_vec)) without materialising the concat:
    # dec-half was already accumulated in `out_dec` above.
    out = out_dec + jnp.dot(attn_vec.astype(watt_ref.dtype), watt_ref[...],
                            preferred_element_type=jnp.float32)

    out_ref[...] = jnp.tanh(out).astype(out_ref.dtype)
    align_ref[...] = align.astype(align_ref.dtype)


def attention_local(encoder_output, decoder_output, p_t, w_local, w_out,
                    *, max_len, local_window, block_b=None,
                    compute_dtype=jnp.bfloat16):
    """Local-attention forward.

    Returns (tanh_attention_output (B,1,H) f32, align_fn (B, max_len) f32).
    `compute_dtype` applies to enc/dec/weights (HBM traffic + MXU inputs);
    all softmax/exp/gaussian/tanh math stays f32 inside the kernel.
    """
    B, L, H = encoder_output.shape
    assert L == max_len
    assert decoder_output.shape == (B, 1, H)
    assert w_local.shape == (H, H) and w_out.shape == (H, 2 * H)

    cd = compute_dtype
    itemsize = jnp.dtype(cd).itemsize

    # ---- layout plumbing: lane/sublane-dense padding + batch tiling ---------
    H_pad = _round_up(H, 128)
    L_pad = _round_up(L, 128)

    # VMEM-capacity-driven limits / tile size (safe on v7x 64 MiB, bigger
    # tiles on v5e/v6e 128 MiB).
    cap = _vmem_capacity_bytes()
    vmem_limit = max(32 * 1024 * 1024, min(int(cap * 0.75), 100 * 1024 * 1024))

    if block_b is None:
        weight_bytes = 2 * (3 * H_pad * H_pad) * itemsize        # double-buffered RHS tiles
        per_row = (2 * L_pad * H_pad * itemsize                   # enc block (double-buffered)
                   + 8 * L_pad * 4                                 # align out + f32 (TB,Lp) temps
                   + 2 * H_pad * itemsize + 10 * H_pad * 4)        # dec/out blocks + f32 temps
        budget = int(vmem_limit * 0.85)
        block_b = max(8, min(((budget - weight_bytes) // per_row) // 8 * 8, 256))
        B_pad8 = _round_up(B, 8)
        if B_pad8 >= 16:
            # keep >= 2 grid steps so "parallel" feeds both TCs / megacore
            block_b = min(block_b, _round_up((B_pad8 + 1) // 2, 8))
        block_b = max(8, min(block_b, B_pad8))
    B_pad = _round_up(B, block_b)

    enc_p = jnp.pad(encoder_output.astype(cd),
                    ((0, B_pad - B), (0, L_pad - L), (0, H_pad - H)))
    dec_p = jnp.pad(decoder_output[:, 0, :].astype(cd),
                    ((0, B_pad - B), (0, H_pad - H)))
    # pad p_t rows with a benign in-range value so padded rows never go all-masked
    p_pad = jnp.pad(p_t.astype(jnp.int32)[:, None],
                    ((0, B_pad - B), (0, 0)),
                    constant_values=max_len // 2)

    # pre-transpose weights (contract RHS dim 0 in-kernel); fuse the two
    # dec-LHS matmuls into one (Hp, 2*Hp) RHS; keep attn-half separate.
    w_loc_t = jnp.pad(w_local.T.astype(cd), ((0, H_pad - H), (0, H_pad - H)))
    w_out_dec_t = jnp.pad(w_out[:, :H].T.astype(cd), ((0, H_pad - H), (0, H_pad - H)))
    w_dec_fused = jnp.concatenate([w_loc_t, w_out_dec_t], axis=1)    # (Hp, 2*Hp)
    w_out_att_t = jnp.pad(w_out[:, H:].T.astype(cd), ((0, H_pad - H), (0, H_pad - H)))

    kernel = functools.partial(_attention_local_kernel, max_len, local_window)

    # TODO(synk): when local_window << max_len, a scalar-prefetched per-row
    # window gather of enc (only 2w+1 positions contribute) would cut HBM
    # traffic by ~L/(2w+1); not implemented here (per-row dynamic DMA).
    out2d, align2d = pl.pallas_call(
        kernel,
        grid=(B_pad // block_b,),
        in_specs=[
            pl.BlockSpec((block_b, 1), lambda b: (b, 0)),                # p_t
            pl.BlockSpec((block_b, L_pad, H_pad), lambda b: (b, 0, 0)),  # encoder
            pl.BlockSpec((block_b, H_pad), lambda b: (b, 0)),            # decoder
            pl.BlockSpec((H_pad, 2 * H_pad), lambda b: (0, 0)),          # [W_local^T | W_out_dec^T]
            pl.BlockSpec((H_pad, H_pad), lambda b: (0, 0)),              # W_out attn-half^T
        ],
        out_specs=[
            pl.BlockSpec((block_b, H_pad), lambda b: (b, 0)),            # tanh output
            pl.BlockSpec((block_b, L_pad), lambda b: (b, 0)),            # align_fn
        ],
        out_shape=(
            jax.ShapeDtypeStruct((B_pad, H_pad), jnp.float32),
            jax.ShapeDtypeStruct((B_pad, L_pad), jnp.float32),
        ),
        compiler_params=pltpu.CompilerParams(
            dimension_semantics=("parallel",),          # megacore / v7x 2nd TC
            vmem_limit_bytes=vmem_limit,
        ),
    )(p_pad, enc_p, dec_p, w_dec_fused, w_out_att_t)

    return out2d[:B, :H][:, None, :], align2d[:B, :L]


def _reference(enc, dec, p_t, w_local, w_out, max_len, w):
    """Pure-JAX transliteration of the PyTorch forward (local path)."""
    pt = max_len - p_t
    left = jnp.maximum(pt - w, 0)
    right = jnp.minimum(pt + w, max_len)
    lin = dec @ w_local.T                                   # (B,1,H)
    scores = jnp.einsum('bih,blh->bl', lin, enc)            # (B,L)
    idx = jnp.arange(max_len)[None, :]
    mask = (idx < left[:, None]) | (idx > right[:, None])
    scores = jnp.where(mask, -jnp.inf, scores)
    align = jax.nn.softmax(scores, axis=1)
    gauss = jnp.exp(-jnp.minimum((idx - pt[:, None]) ** 2, 100).astype(jnp.float32)
                    / (2.0 * (w / 2.0) ** 2))
    att = align * gauss
    attn_vec = jnp.einsum('bl,blh->bh', att, enc)
    concat = jnp.concatenate([dec[:, 0], attn_vec], axis=1)
    out = jnp.tanh(concat @ w_out.T)[:, None, :]
    return out, align


if __name__ == "__main__":
    B, H, L, WIN = 2, 32, 16, 4          # batch, hidden_size, max_len, local_window

    key = jax.random.PRNGKey(0)
    k1, k2, k3, k4, k5 = jax.random.split(key, 5)
    encoder_output = jax.random.normal(k1, (B, L, H), jnp.float32)
    decoder_output = jax.random.normal(k2, (B, 1, H), jnp.float32)
    p_t = jnp.array([3, 10], dtype=jnp.int32)

    # nn.init.uniform_(w, -0.1, 0.1); PyTorch Linear weight is (out, in).
    w_local = jax.random.uniform(k3, (H, H), jnp.float32, -0.1, 0.1)
    w_out = jax.random.uniform(k4, (H, 2 * H), jnp.float32, -0.1, 0.1)
    # global_linear (50, H) exists in __init__ but is unused on the 'local' path.
    _w_global_unused = jax.random.uniform(k5, (50, H), jnp.float32, -0.1, 0.1)
    # TODO(synk): 'global' attn_type branch not exercised here (config fixed to 'local').

    ref_out, ref_align = _reference(encoder_output, decoder_output, p_t,
                                    w_local, w_out, L, WIN)

    # f32 compute path (tight validation check).
    out32, align32 = attention_local(
        encoder_output, decoder_output, p_t, w_local, w_out,
        max_len=L, local_window=WIN, compute_dtype=jnp.float32)
    jax.block_until_ready((out32, align32))
    assert out32.shape == (B, 1, H) and align32.shape == (B, L)
    assert jnp.allclose(out32, ref_out, atol=5e-3, rtol=5e-3)
    assert jnp.allclose(align32, ref_align, atol=5e-3, rtol=5e-3)

    # bf16 compute path (default; HBM / MXU win; looser tolerance).
    out16, align16 = attention_local(
        encoder_output, decoder_output, p_t, w_local, w_out,
        max_len=L, local_window=WIN)
    jax.block_until_ready((out16, align16))
    assert out16.shape == (B, 1, H) and align16.shape == (B, L)
    assert jnp.allclose(out16, ref_out, atol=5e-2, rtol=5e-2)
    assert jnp.allclose(align16, ref_align, atol=5e-2, rtol=5e-2)

    print("KERNEL_OK")
</pallas_src>

<mosaic_0001>
module attributes {stable_mosaic.version = 11 : i64} {
  func.func @_attention_local_kernel(%arg0: i32, %arg1: memref<8x1xi32, #tpu.memory_space<vmem>>, %arg2: memref<8x128x128xf32, #tpu.memory_space<vmem>>, %arg3: memref<8x128xf32, #tpu.memory_space<vmem>>, %arg4: memref<128x256xf32, #tpu.memory_space<vmem>>, %arg5: memref<128x128xf32, #tpu.memory_space<vmem>>, %arg6: memref<8x128xf32, #tpu.memory_space<vmem>>, %arg7: memref<8x128xf32, #tpu.memory_space<vmem>>) attributes {dimension_semantics = [#tpu.dimension_semantics<parallel>], iteration_bounds = array<i64: 1>, scalar_prefetch = 0 : i64, scratch_operands = 0 : i64, tpu.core_type = #tpu.core_type<tc>, window_params = [{transform_indices = @transform_0, window_bounds = array<i64: 8, 1>}, {transform_indices = @transform_1, window_bounds = array<i64: 8, 128, 128>}, {transform_indices = @transform_2, window_bounds = array<i64: 8, 128>}, {pipeline_mode = #tpu.pipeline_mode<synchronous>, transform_indices = @transform_3, window_bounds = array<i64: 128, 256>}, {pipeline_mode = #tpu.pipeline_mode<synchronous>, transform_indices = @transform_4, window_bounds = array<i64: 128, 128>}, {transform_indices = @transform_5, window_bounds = array<i64: 8, 128>}, {transform_indices = @transform_6, window_bounds = array<i64: 8, 128>}]} {
    %c0 = arith.constant 0 : index
    %c0_0 = arith.constant 0 : index
    %c0_1 = arith.constant 0 : index
    %0 = vector.load %arg2[%c0, %c0_0, %c0_1] : memref<8x128x128xf32, #tpu.memory_space<vmem>>, vector<8x128x128xf32>
    %c0_2 = arith.constant 0 : index
    %c0_3 = arith.constant 0 : index
    %1 = vector.load %arg3[%c0_2, %c0_3] : memref<8x128xf32, #tpu.memory_space<vmem>>, vector<8x128xf32>
    %c0_4 = arith.constant 0 : index
    %c0_5 = arith.constant 0 : index
    %2 = vector.load %arg4[%c0_4, %c0_5] : memref<128x256xf32, #tpu.memory_space<vmem>>, vector<128x256xf32>
    %cst = arith.constant dense<0.000000e+00> : vector<8x256xf32>
    %3 = tpu.matmul %1, %2, %cst {dimension_numbers = #tpu.dot_dimension_numbers<[1], [0], [0], [1], [0, 0, 1, 1], [], []>} : vector<8x128xf32>, vector<128x256xf32>, vector<8x256xf32> -> vector<8x256xf32>
    %4 = vector.extract_strided_slice %3 {offsets = [0, 0], sizes = [8, 128], strides = [1, 1]} : vector<8x256xf32> to vector<8x128xf32>
    %5 = vector.extract_strided_slice %3 {offsets = [0, 128], sizes = [8, 128], strides = [1, 1]} : vector<8x256xf32> to vector<8x128xf32>
    %6 = vector.shape_cast %4 : vector<8x128xf32> to vector<8x1x128xf32>
    "tpu.trace_start"() <{level = 10 : i32, message = "bqh,blh->bql"}> : () -> ()
    %cst_6 = arith.constant dense<0.000000e+00> : vector<8x1x128xf32>
    %7 = tpu.matmul %6, %0, %cst_6 {dimension_numbers = #tpu.dot_dimension_numbers<[2], [2], [1], [1], [0, 0, 0, 1, 1, 1], [0], [0]>} : vector<8x1x128xf32>, vector<8x128x128xf32>, vector<8x1x128xf32> -> vector<8x1x128xf32>
    "tpu.trace_stop"() : () -> ()
    %8 = vector.shape_cast %7 : vector<8x1x128xf32> to vector<8x128xf32>
    %c0_7 = arith.constant 0 : index
    %c0_8 = arith.constant 0 : index
    %9 = vector.load %arg1[%c0_7, %c0_8] : memref<8x1xi32, #tpu.memory_space<vmem>>, vector<8x1xi32>
    %c16_i32 = arith.constant 16 : i32
    %10 = vector.broadcast %c16_i32 : i32 to vector<8x1xi32>
    %11 = arith.subi %10, %9 : vector<8x1xi32>
    %c4_i32 = arith.constant 4 : i32
    %12 = vector.broadcast %c4_i32 : i32 to vector<8x1xi32>
    %13 = arith.subi %11, %12 : vector<8x1xi32>
    %c0_i32 = arith.constant 0 : i32
    %14 = vector.broadcast %c0_i32 : i32 to vector<8x1xi32>
    %15 = arith.maxsi %13, %14 : vector<8x1xi32>
    %c4_i32_9 = arith.constant 4 : i32
    %16 = vector.broadcast %c4_i32_9 : i32 to vector<8x1xi32>
    %17 = arith.addi %11, %16 : vector<8x1xi32>
    %c16_i32_10 = arith.constant 16 : i32
    %18 = vector.broadcast %c16_i32_10 : i32 to vector<8x1xi32>
    %19 = arith.minsi %17, %18 : vector<8x1xi32>
    %20 = tpu.iota {dimensions = array<i32: 1>} : vector<8x128xi32>
    %21 = vector.broadcast %15 : vector<8x1xi32> to vector<8x128xi32>
    %22 = arith.cmpi slt, %20, %21 : vector<8x128xi32>
    %23 = vector.broadcast %19 : vector<8x1xi32> to vector<8x128xi32>
    %24 = arith.cmpi sgt, %20, %23 : vector<8x128xi32>
    %25 = arith.ori %22, %24 : vector<8x128xi1>
    %c16_i32_11 = arith.constant 16 : i32
    %26 = vector.broadcast %c16_i32_11 : i32 to vector<8x128xi32>
    %27 = arith.cmpi sge, %20, %26 : vector<8x128xi32>
    %28 = arith.ori %25, %27 : vector<8x128xi1>
    %cst_12 = arith.constant 0xFF800000 : f32
    %29 = vector.broadcast %cst_12 : f32 to vector<8x128xf32>
    %30 = arith.select %28, %29, %8 : vector<8x128xi1>, vector<8x128xf32>
    %cst_13 = arith.constant dense<0xFF800000> : vector<8xf32>
    %31 = vector.multi_reduction <maximumf>, %30, %cst_13 [1] : vector<8x128xf32> to vector<8xf32>
    %32 = vector.shape_cast %31 : vector<8xf32> to vector<8x1xf32>
    %33 = vector.broadcast %32 : vector<8x1xf32> to vector<8x128xf32>
    %34 = arith.subf %30, %33 : vector<8x128xf32>
    %35 = math.exp %34 : vector<8x128xf32>
    %cst_14 = arith.constant dense<0.000000e+00> : vector<8xf32>
    %36 = vector.multi_reduction <add>, %35, %cst_14 [1] : vector<8x128xf32> to vector<8xf32>
    %37 = vector.shape_cast %36 : vector<8xf32> to vector<8x1xf32>
    %38 = tpu.reciprocal %37 {approx = true} : vector<8x1xf32> -> vector<8x1xf32>
    %39 = vector.broadcast %38 : vector<8x1xf32> to vector<8x128xf32>
    %40 = arith.mulf %35, %39 : vector<8x128xf32>
    %41 = vector.broadcast %11 : vector<8x1xi32> to vector<8x128xi32>
    %42 = arith.subi %20, %41 : vector<8x128xi32>
    %43 = arith.sitofp %42 : vector<8x128xi32> to vector<8x128xf32>
    %44 = arith.mulf %43, %43 : vector<8x128xf32>
    %cst_15 = arith.constant 1.000000e+02 : f32
    %45 = vector.broadcast %cst_15 : f32 to vector<8x128xf32>
    %46 = arith.minimumf %44, %45 : vector<8x128xf32>
    %cst_16 = arith.constant 0.000000e+00 : f32
    %47 = vector.broadcast %cst_16 : f32 to vector<8x128xf32>
    %48 = arith.subf %47, %46 : vector<8x128xf32>
    %cst_17 = arith.constant 8.000000e+00 : f32
    %49 = vector.broadcast %cst_17 : f32 to vector<8x128xf32>
    %50 = arith.divf %48, %49 : vector<8x128xf32>
    %51 = math.exp %50 : vector<8x128xf32>
    %52 = arith.mulf %40, %51 : vector<8x128xf32>
    %53 = vector.shape_cast %52 : vector<8x128xf32> to vector<8x1x128xf32>
    "tpu.trace_start"() <{level = 10 : i32, message = "bql,blh->bqh"}> : () -> ()
    %cst_18 = arith.constant dense<0.000000e+00> : vector<8x1x128xf32>
    %54 = tpu.matmul %53, %0, %cst_18 {dimension_numbers = #tpu.dot_dimension_numbers<[2], [1], [1], [2], [0, 0, 0, 1, 1, 2], [0], [0]>} : vector<8x1x128xf32>, vector<8x128x128xf32>, vector<8x1x128xf32> -> vector<8x1x128xf32>
    "tpu.trace_stop"() : () -> ()
    %55 = vector.shape_cast %54 : vector<8x1x128xf32> to vector<8x128xf32>
    %c0_19 = arith.constant 0 : index
    %c0_20 = arith.constant 0 : index
    %56 = vector.load %arg5[%c0_19, %c0_20] : memref<128x128xf32, #tpu.memory_space<vmem>>, vector<128x128xf32>
    %cst_21 = arith.constant dense<0.000000e+00> : vector<8x128xf32>
    %57 = tpu.matmul %55, %56, %cst_21 {dimension_numbers = #tpu.dot_dimension_numbers<[1], [0], [0], [1], [0, 0, 1, 1], [], []>} : vector<8x128xf32>, vector<128x128xf32>, vector<8x128xf32> -> vector<8x128xf32>
    %58 = arith.addf %5, %57 : vector<8x128xf32>
    %59 = math.tanh %58 : vector<8x128xf32>
    %c0_22 = arith.constant 0 : index
    %c0_23 = arith.constant 0 : index
    %60 = vector.load %arg6[%c0_22, %c0_23] : memref<8x128xf32, #tpu.memory_space<vmem>>, vector<8x128xf32>
    tpu.vector_store %arg6[%c0_22, %c0_23], %59 {strides = array<i32>} : memref<8x128xf32, #tpu.memory_space<vmem>>, vector<8x128xf32>,
    %c0_24 = arith.constant 0 : index
    %c0_25 = arith.constant 0 : index
    %61 = vector.load %arg7[%c0_24, %c0_25] : memref<8x128xf32, #tpu.memory_space<vmem>>, vector<8x128xf32>
    tpu.vector_store %arg7[%c0_24, %c0_25], %40 {strides = array<i32>} : memref<8x128xf32, #tpu.memory_space<vmem>>, vector<8x128xf32>,
    return
  }
  func.func @transform_0(%arg0: i32) -> (i32, i32) {
    %c0_i32 = arith.constant 0 : i32
    %c0_i32_0 = arith.constant 0 : i32
    return %arg0, %c0_i32 : i32, i32
  }
  func.func @transform_1(%arg0: i32) -> (i32, i32, i32) {
    %c0_i32 = arith.constant 0 : i32
    %c0_i32_0 = arith.constant 0 : i32
    %c0_i32_1 = arith.constant 0 : i32
    return %arg0, %c0_i32, %c0_i32_0 : i32, i32, i32
  }
  func.func @transform_2(%arg0: i32) -> (i32, i32) {
    %c0_i32 = arith.constant 0 : i32
    %c0_i32_0 = arith.constant 0 : i32
    return %arg0, %c0_i32 : i32, i32
  }
  func.func @transform_3(%arg0: i32) -> (i32, i32) {
    %c0_i32 = arith.constant 0 : i32
    %c0_i32_0 = arith.constant 0 : i32
    %c0_i32_1 = arith.constant 0 : i32
    return %c0_i32, %c0_i32_0 : i32, i32
  }
  func.func @transform_4(%arg0: i32) -> (i32, i32) {
    %c0_i32 = arith.constant 0 : i32
    %c0_i32_0 = arith.constant 0 : i32
    %c0_i32_1 = arith.constant 0 : i32
    return %c0_i32, %c0_i32_0 : i32, i32
  }
  func.func @transform_5(%arg0: i32) -> (i32, i32) {
    %c0_i32 = arith.constant 0 : i32
    %c0_i32_0 = arith.constant 0 : i32
    return %arg0, %c0_i32 : i32, i32
  }
  func.func @transform_6(%arg0: i32) -> (i32, i32) {
    %c0_i32 = arith.constant 0 : i32
    %c0_i32_0 = arith.constant 0 : i32
    return %arg0, %c0_i32 : i32, i32
  }
}

</mosaic_0001>

<llo_original>
// kernel: tpu_custom_call.1
$region0: #{tpu_custom_call.1}
  #allocation0 [shape = 'u32[]', space=smem, size = 0x4, offset = 0x4, fixed_abs, tag = 'smem constant byte address 0x4 - core index']
  #allocation1 [shape = 'u32[144,128]{1,0:T(1,128)}', space=vmem, size = 0x12000, scoped, tag = 'internal scratch']
  %s0 = inlined_call_operand.vmem [shape: s32[8,1], index: 0, kind: input, shape index: {}]
  %s1 = inlined_call_operand.hbm [shape: f32[8,128,128], index: 1, kind: input, shape index: {}]
  %s2 = inlined_call_operand.vmem [shape: f32[8,128], index: 2, kind: input, shape index: {}]
  %s3 = inlined_call_operand.hbm [shape: f32[128,256], index: 3, kind: input, shape index: {}]
  %s4 = inlined_call_operand.hbm [shape: f32[128,128], index: 4, kind: input, shape index: {}]
  %s5 = inlined_call_operand.hbm [shape: f32[8,128], index: 5, kind: output, shape index: {0}]
  %s6 = inlined_call_operand.hbm [shape: f32[8,128], index: 6, kind: output, shape index: {1}]
  %7 = xla_tuple %s5, %s6
  %s8 = sld [smem:[#allocation0]]
  $region50: #{tpu_custom_call.1} parent=0
    _
  %s10 = ssub.s32 1, %s8
  %s11 = scalar_select 0, %s10, %s8
  $region1: #{tpu_custom_call.1} parent=0
    #allocation2 [shape = 'u8[524288]{0}', space=vmem, size = 0x80000, scoped, tag = 'input window, operand 1, single buffered']
    #allocation3 [shape = 's32[1]{0}', space=sflag, size = 0x4, scoped, tag = 'scoped memory for tpu_custom_call.1']
    #allocation4 [shape = 's32[1]{0}', space=sflag, size = 0x4, scoped, tag = 'scoped memory for tpu_custom_call.1']
    #allocation5 [shape = 'u8[131072]{0}', space=vmem, size = 0x20000, scoped, tag = 'input window, operand 3, single buffered']
    #allocation6 [shape = 's32[1]{0}', space=sflag, size = 0x4, scoped, tag = 'scoped memory for tpu_custom_call.1']
    #allocation7 [shape = 'u8[65536]{0}', space=vmem, size = 0x10000, scoped, tag = 'input window, operand 4, single buffered']
    #allocation8 [shape = 'u8[4096]{0}', space=vmem, size = 0x1000, scoped, tag = 'output window, operand 0, single buffered']
    #allocation9 [shape = 'u8[4096]{0}', space=vmem, size = 0x1000, scoped, tag = 'output window, operand 1, single buffered']
    #allocation10 [shape = 's32[1]{0}', space=sflag, size = 0x4, scoped, tag = 'scoped memory for tpu_custom_call.1']
    %12 = vsyncpa [#allocation3], 0
    %13 = vsyncpa [#allocation6], 0
    %14 = vsyncpa [#allocation4], 0
    %15 = vsyncpa [#allocation10], 0
    // Predicated region
    $region2: #{tpu_custom_call.1} parent=1 // pred_check
      _
    $region3: #{tpu_custom_call.1} parent=1 // pred_check_branch
      %17 = sbr.rel (0) target = $region5
    $region4: #{tpu_custom_call.1} parent=1 // pred_region
      _
    $region5: #{tpu_custom_call.1} parent=1 // pred_fallthru
      _
    // Predicated region
    $region6: #{tpu_custom_call.1} parent=1 // pred_check
      _
    $region7: #{tpu_custom_call.1} parent=1 // pred_check_branch
      %19 = sbr.rel (0) target = $region9
    $region8: #{tpu_custom_call.1} parent=1 // pred_region
      %s21 = ssub.s32 16384, 16384
      %22 = vsyncadd [#allocation3], %s21
      %s23 = sshll.u32 [#allocation2], 4
      %s24 = int_to_ptr.vmem [resolvable:$true] %s23
      %29 = dma.hbm_to_vmem [thread:$0]  %s1, 16384, %s24, [#allocation3], 128, 128, 8
    $region9: #{tpu_custom_call.1} parent=1 // pred_fallthru
      _
    // Predicated region
    $region10: #{tpu_custom_call.1} parent=1 // pred_check
      _
    $region11: #{tpu_custom_call.1} parent=1 // pred_check_branch
      %31 = sbr.rel (0) target = $region13
    $region12: #{tpu_custom_call.1} parent=1 // pred_region
      _
    $region13: #{tpu_custom_call.1} parent=1 // pred_fallthru
      _
    // Predicated region
    $region14: #{tpu_custom_call.1} parent=1 // pred_check
      _
    $region15: #{tpu_custom_call.1} parent=1 // pred_check_branch
      %33 = sbr.rel (0) target = $region17
    $region16: #{tpu_custom_call.1} parent=1 // pred_region
      %s35 = ssub.s32 4096, 4096
      %36 = vsyncadd [#allocation6], %s35
      %s37 = sshll.u32 [#allocation5], 4
      %s38 = int_to_ptr.vmem [resolvable:$true] %s37
      %43 = dma.hbm_to_vmem [thread:$0]  %s3, 4096, %s38, [#allocation6], 256, 256, 16
    $region17: #{tpu_custom_call.1} parent=1 // pred_fallthru
      _
    // Predicated region
    $region18: #{tpu_custom_call.1} parent=1 // pred_check
      _
    $region19: #{tpu_custom_call.1} parent=1 // pred_check_branch
      %45 = sbr.rel (0) target = $region21
    $region20: #{tpu_custom_call.1} parent=1 // pred_region
      %s47 = ssub.s32 2048, 2048
      %48 = vsyncadd [#allocation6], %s47
      %s49 = sshll.u32 [#allocation7], 4
      %s50 = int_to_ptr.vmem [resolvable:$true] %s49
      %55 = dma.hbm_to_vmem [thread:$0]  %s4, 2048, %s50, [#allocation6], 128, 128, 8
    $region21: #{tpu_custom_call.1} parent=1 // pred_fallthru
      _
    // Predicated region
    $region22: #{tpu_custom_call.1} parent=1 // pred_check
      _
    $region23: #{tpu_custom_call.1} parent=1 // pred_check_branch
      %57 = sbr.rel (0) target = $region25
    $region24: #{tpu_custom_call.1} parent=1 // pred_region
      %58 = dma.done [#allocation3], 16384
    $region25: #{tpu_custom_call.1} parent=1 // pred_fallthru
      _
    // Predicated region
    $region26: #{tpu_custom_call.1} parent=1 // pred_check
      _
    $region27: #{tpu_custom_call.1} parent=1 // pred_check_branch
      %60 = sbr.rel (0) target = $region29
    $region28: #{tpu_custom_call.1} parent=1 // pred_region
      %61 = dma.done [#allocation6], 4096
    $region29: #{tpu_custom_call.1} parent=1 // pred_fallthru
      _
    // Predicated region
    $region30: #{tpu_custom_call.1} parent=1 // pred_check
      _
    $region31: #{tpu_custom_call.1} parent=1 // pred_check_branch
      %63 = sbr.rel (0) target = $region33
    $region32: #{tpu_custom_call.1} parent=1 // pred_region
      %64 = dma.done [#allocation6], 2048
    $region33: #{tpu_custom_call.1} parent=1 // pred_fallthru
      _
    %v65 = vld [vmem:[#allocation2] sm:$0xff]
    %v66 = vld [vmem:[#allocation2 + $0x8] sm:$0xff]
    %v67 = vld [vmem:[#allocation2 + $0x10] sm:$0xff]
    %v68 = vld [vmem:[#allocation2 + $0x18] sm:$0xff]
    %v69 = vld [vmem:[#allocation2 + $0x20] sm:$0xff]
    %v70 = vld [vmem:[#allocation2 + $0x28] sm:$0xff]
    %v71 = vld [vmem:[#allocation2 + $0x30] sm:$0xff]
    %v72 = vld [vmem:[#allocation2 + $0x38] sm:$0xff]
    %v73 = vld [vmem:[#allocation2 + $0x40] sm:$0xff]
    %v74 = vld [vmem:[#allocation2 + $0x48] sm:$0xff]
    %v75 = vld [vmem:[#allocation2 + $0x50] sm:$0xff]
    %v76 = vld [vmem:[#allocation2 + $0x58] sm:$0xff]
    %v77 = vld [vmem:[#allocation2 + $0x60] sm:$0xff]
    %v78 = vld [vmem:[#allocation2 + $0x68] sm:$0xff]
    %v79 = vld [vmem:[#allocation2 + $0x70] sm:$0xff]
    %v80 = vld [vmem:[#allocation2 + $0x78] sm:$0xff]
    %v81 = vld [vmem:[#allocation2 + $0x80] sm:$0xff]
    %v82 = vld [vmem:[#allocation2 + $0x88] sm:$0xff]
    %v83 = vld [vmem:[#allocation2 + $0x90] sm:$0xff]
    %v84 = vld [vmem:[#allocation2 + $0x98] sm:$0xff]
    %v85 = vld [vmem:[#allocation2 + $0xa0] sm:$0xff]
    %v86 = vld [vmem:[#allocation2 + $0xa8] sm:$0xff]
    %v87 = vld [vmem:[#allocation2 + $0xb0] sm:$0xff]
    %v88 = vld [vmem:[#allocation2 + $0xb8] sm:$0xff]
    %v89 = vld [vmem:[#allocation2 + $0xc0] sm:$0xff]
    %v90 = vld [vmem:[#allocation2 + $0xc8] sm:$0xff]
    %v91 = vld [vmem:[#allocation2 + $0xd0] sm:$0xff]
    %v92 = vld [vmem:[#allocation2 + $0xd8] sm:$0xff]
    %v93 = vld [vmem:[#allocation2 + $0xe0] sm:$0xff]
    %v94 = vld [vmem:[#allocation2 + $0xe8] sm:$0xff]
    %v95 = vld [vmem:[#allocation2 + $0xf0] sm:$0xff]
    %v96 = vld [vmem:[#allocation2 + $0xf8] sm:$0xff]
    %v97 = vld [vmem:[#allocation2 + $0x100] sm:$0xff]
    %v98 = vld [vmem:[#allocation2 + $0x108] sm:$0xff]
    %v99 = vld [vmem:[#allocation2 + $0x110] sm:$0xff]
    %v100 = vld [vmem:[#allocation2 + $0x118] sm:$0xff]
    %v101 = vld [vmem:[#allocation2 + $0x120] sm:$0xff]
    %v102 = vld [vmem:[#allocation2 + $0x128] sm:$0xff]
    %v103 = vld [vmem:[#allocation2 + $0x130] sm:$0xff]
    %v104 = vld [vmem:[#allocation2 + $0x138] sm:$0xff]
    %v105 = vld [vmem:[#allocation2 + $0x140] sm:$0xff]
    %v106 = vld [vmem:[#allocation2 + $0x148] sm:$0xff]
    %v107 = vld [vmem:[#allocation2 + $0x150] sm:$0xff]
    %v108 = vld [vmem:[#allocation2 + $0x158] sm:$0xff]
    %v109 = vld [vmem:[#allocation2 + $0x160] sm:$0xff]
    %v110 = vld [vmem:[#allocation2 + $0x168] sm:$0xff]
    %v111 = vld [vmem:[#allocation2 + $0x170] sm:$0xff]
    %v112 = vld [vmem:[#allocation2 + $0x178] sm:$0xff]
    %v113 = vld [vmem:[#allocation2 + $0x180] sm:$0xff]
    %v114 = vld [vmem:[#allocation2 + $0x188] sm:$0xff]
    %v115 = vld [vmem:[#allocation2 + $0x190] sm:$0xff]
    %v116 = vld [vmem:[#allocation2 + $0x198] sm:$0xff]
    %v117 = vld [vmem:[#allocation2 + $0x1a0] sm:$0xff]
    %v118 = vld [vmem:[#allocation2 + $0x1a8] sm:$0xff]
    %v119 = vld [vmem:[#allocation2 + $0x1b0] sm:$0xff]
    %v120 = vld [vmem:[#allocation2 + $0x1b8] sm:$0xff]
    %v121 = vld [vmem:[#allocation2 + $0x1c0] sm:$0xff]
    %v122 = vld [vmem:[#allocation2 + $0x1c8] sm:$0xff]
    %v123 = vld [vmem:[#allocation2 + $0x1d0] sm:$0xff]
    %v124 = vld [vmem:[#allocation2 + $0x1d8] sm:$0xff]
    %v125 = vld [vmem:[#allocation2 + $0x1e0] sm:$0xff]
    %v126 = vld [vmem:[#allocation2 + $0x1e8] sm:$0xff]
    %v127 = vld [vmem:[#allocation2 + $0x1f0] sm:$0xff]
    %v128 = vld [vmem:[#allocation2 + $0x1f8] sm:$0xff]
    %v129 = vld [vmem:[#allocation2 + $0x200] sm:$0xff]
    %v130 = vld [vmem:[#allocation2 + $0x208] sm:$0xff]
    %v131 = vld [vmem:[#allocation2 + $0x210] sm:$0xff]
    %v132 = vld [vmem:[#allocation2 + $0x218] sm:$0xff]
    %v133 = vld [vmem:[#allocation2 + $0x220] sm:$0xff]
    %v134 = vld [vmem:[#allocation2 + $0x228] sm:$0xff]
    %v135 = vld [vmem:[#allocation2 + $0x230] sm:$0xff]
    %v136 = vld [vmem:[#allocation2 + $0x238] sm:$0xff]
    %v137 = vld [vmem:[#allocation2 + $0x240] sm:$0xff]
    %v138 = vld [vmem:[#allocation2 + $0x248] sm:$0xff]
    %v139 = vld [vmem:[#allocation2 + $0x250] sm:$0xff]
    %v140 = vld [vmem:[#allocation2 + $0x258] sm:$0xff]
    %v141 = vld [vmem:[#allocation2 + $0x260] sm:$0xff]
    %v142 = vld [vmem:[#allocation2 + $0x268] sm:$0xff]
    %v143 = vld [vmem:[#allocation2 + $0x270] sm:$0xff]
    %v144 = vld [vmem:[#allocation2 + $0x278] sm:$0xff]
    %v145 = vld [vmem:[#allocation2 + $0x280] sm:$0xff]
    %v146 = vld [vmem:[#allocation2 + $0x288] sm:$0xff]
    %v147 = vld [vmem:[#allocation2 + $0x290] sm:$0xff]
    %v148 = vld [vmem:[#allocation2 + $0x298] sm:$0xff]
    %v149 = vld [vmem:[#allocation2 + $0x2a0] sm:$0xff]
    %v150 = vld [vmem:[#allocation2 + $0x2a8] sm:$0xff]
    %v151 = vld [vmem:[#allocation2 + $0x2b0] sm:$0xff]
    %v152 = vld [vmem:[#allocation2 + $0x2b8] sm:$0xff]
    %v153 = vld [vmem:[#allocation2 + $0x2c0] sm:$0xff]
    %v154 = vld [vmem:[#allocation2 + $0x2c8] sm:$0xff]
    %v155 = vld [vmem:[#allocation2 + $0x2d0] sm:$0xff]
    %v156 = vld [vmem:[#allocation2 + $0x2d8] sm:$0xff]
    %v157 = vld [vmem:[#allocation2 + $0x2e0] sm:$0xff]
    %v158 = vld [vmem:[#allocation2 + $0x2e8] sm:$0xff]
    %v159 = vld [vmem:[#allocation2 + $0x2f0] sm:$0xff]
    %v160 = vld [vmem:[#allocation2 + $0x2f8] sm:$0xff]
    %v161 = vld [vmem:[#allocation2 + $0x300] sm:$0xff]
    %v162 = vld [vmem:[#allocation2 + $0x308] sm:$0xff]
    %v163 = vld [vmem:[#allocation2 + $0x310] sm:$0xff]
    %v164 = vld [vmem:[#allocation2 + $0x318] sm:$0xff]
    %v165 = vld [vmem:[#allocation2 + $0x320] sm:$0xff]
    %v166 = vld [vmem:[#allocation2 + $0x328] sm:$0xff]
    %v167 = vld [vmem:[#allocation2 + $0x330] sm:$0xff]
    %v168 = vld [vmem:[#allocation2 + $0x338] sm:$0xff]
    %v169 = vld [vmem:[#allocation2 + $0x340] sm:$0xff]
    %v170 = vld [vmem:[#allocation2 + $0x348] sm:$0xff]
    %v171 = vld [vmem:[#allocation2 + $0x350] sm:$0xff]
    %v172 = vld [vmem:[#allocation2 + $0x358] sm:$0xff]
    %v173 = vld [vmem:[#allocation2 + $0x360] sm:$0xff]
    %v174 = vld [vmem:[#allocation2 + $0x368] sm:$0xff]
    %v175 = vld [vmem:[#allocation2 + $0x370] sm:$0xff]
    %v176 = vld [vmem:[#allocation2 + $0x378] sm:$0xff]
    %v177 = vld [vmem:[#allocation2 + $0x380] sm:$0xff]
    %v178 = vld [vmem:[#allocation2 + $0x388] sm:$0xff]
    %v179 = vld [vmem:[#allocation2 + $0x390] sm:$0xff]
    %v180 = vld [vmem:[#allocation2 + $0x398] sm:$0xff]
    %v181 = vld [vmem:[#allocation2 + $0x3a0] sm:$0xff]
    %v182 = vld [vmem:[#allocation2 + $0x3a8] sm:$0xff]
    %v183 = vld [vmem:[#allocation2 + $0x3b0] sm:$0xff]
    %v184 = vld [vmem:[#allocation2 + $0x3b8] sm:$0xff]
    %v185 = vld [vmem:[#allocation2 + $0x3c0] sm:$0xff]
    %v186 = vld [vmem:[#allocation2 + $0x3c8] sm:$0xff]
    %v187 = vld [vmem:[#allocation2 + $0x3d0] sm:$0xff]
    %v188 = vld [vmem:[#allocation2 + $0x3d8] sm:$0xff]
    %v189 = vld [vmem:[#allocation2 + $0x3e0] sm:$0xff]
    %v190 = vld [vmem:[#allocation2 + $0x3e8] sm:$0xff]
    %v191 = vld [vmem:[#allocation2 + $0x3f0] sm:$0xff]
    %v192 = vld [vmem:[#allocation2 + $0x3f8] sm:$0xff]
    %v193 = vld [vmem:[%s2] sm:$0xff]
    %v194 = vld [vmem:[#allocation5] sm:$0xff]
    %v195 = vld [vmem:[#allocation5 + $0x8] sm:$0xff]
    %v196 = vld [vmem:[#allocation5 + $0x10] sm:$0xff]
    %v197 = vld [vmem:[#allocation5 + $0x18] sm:$0xff]
    %v198 = vld [vmem:[#allocation5 + $0x20] sm:$0xff]
    %v199 = vld [vmem:[#allocation5 + $0x28] sm:$0xff]
    %v200 = vld [vmem:[#allocation5 + $0x30] sm:$0xff]
    %v201 = vld [vmem:[#allocation5 + $0x38] sm:$0xff]
    %v202 = vld [vmem:[#allocation5 + $0x40] sm:$0xff]
    %v203 = vld [vmem:[#allocation5 + $0x48] sm:$0xff]
    %v204 = vld [vmem:[#allocation5 + $0x50] sm:$0xff]
    %v205 = vld [vmem:[#allocation5 + $0x58] sm:$0xff]
    %v206 = vld [vmem:[#allocation5 + $0x60] sm:$0xff]
    %v207 = vld [vmem:[#allocation5 + $0x68] sm:$0xff]
    %v208 = vld [vmem:[#allocation5 + $0x70] sm:$0xff]
    %v209 = vld [vmem:[#allocation5 + $0x78] sm:$0xff]
    %v210 = vld [vmem:[#allocation5 + $0x80] sm:$0xff]
    %v211 = vld [vmem:[#allocation5 + $0x88] sm:$0xff]
    %v212 = vld [vmem:[#allocation5 + $0x90] sm:$0xff]
    %v213 = vld [vmem:[#allocation5 + $0x98] sm:$0xff]
    %v214 = vld [vmem:[#allocation5 + $0xa0] sm:$0xff]
    %v215 = vld [vmem:[#allocation5 + $0xa8] sm:$0xff]
    %v216 = vld [vmem:[#allocation5 + $0xb0] sm:$0xff]
    %v217 = vld [vmem:[#allocation5 + $0xb8] sm:$0xff]
    %v218 = vld [vmem:[#allocation5 + $0xc0] sm:$0xff]
    %v219 = vld [vmem:[#allocation5 + $0xc8] sm:$0xff]
    %v220 = vld [vmem:[#allocation5 + $0xd0] sm:$0xff]
    %v221 = vld [vmem:[#allocation5 + $0xd8] sm:$0xff]
    %v222 = vld [vmem:[#allocation5 + $0xe0] sm:$0xff]
    %v223 = vld [vmem:[#allocation5 + $0xe8] sm:$0xff]
    %v224 = vld [vmem:[#allocation5 + $0xf0] sm:$0xff]
    %v225 = vld [vmem:[#allocation5 + $0xf8] sm:$0xff]
    %226 = vmatprep.subr.mxu0 %v195
    %227 = vmatpush1.msra.mxu0 %v194
    %228 = vmatprep.subr.mxu0 %v197
    %229 = vmatpush1.msra.mxu0 %v196
    %230 = vmatprep.subr.mxu0 %v199
    %231 = vmatpush1.msra.mxu0 %v198
    %232 = vmatprep.subr.mxu0 %v201
    %233 = vmatpush1.msra.mxu0 %v200
    %234 = vmatprep.subr.mxu0 %v203
    %235 = vmatpush1.msra.mxu0 %v202
    %236 = vmatprep.subr.mxu0 %v205
    %237 = vmatpush1.msra.mxu0 %v204
    %238 = vmatprep.subr.mxu0 %v207
    %239 = vmatpush1.msra.mxu0 %v206
    %240 = vmatprep.subr.mxu0 %v209
    %241 = vmatpush1.msra.mxu0 %v208
    %242 = vmatprep.subr.mxu0 %v211
    %243 = vmatpush1.msra.mxu0 %v210
    %244 = vmatprep.subr.mxu0 %v213
    %245 = vmatpush1.msra.mxu0 %v212
    %246 = vmatprep.subr.mxu0 %v215
    %247 = vmatpush1.msra.mxu0 %v214
    %248 = vmatprep.subr.mxu0 %v217
    %249 = vmatpush1.msra.mxu0 %v216
    %250 = vmatprep.subr.mxu0 %v219
    %251 = vmatpush1.msra.mxu0 %v218
    %252 = vmatprep.subr.mxu0 %v221
    %253 = vmatpush1.msra.mxu0 %v220
    %254 = vmatprep.subr.mxu0 %v223
    %255 = vmatpush1.msra.mxu0 %v222
    %256 = vmatprep.subr.mxu0 %v225
    %257 = vmatpush1.msra.mxu0 %v224
    %258 = vmatprep.subr.mxu0 0.0
    %259 = vmatpush1.msra.mxu0 0.0
    %260 = vmatprep.subr.mxu0 0.0
    %261 = vmatpush1.msra.mxu0 0.0
    %262 = vmatprep.subr.mxu0 0.0
    %263 = vmatpush1.msra.mxu0 0.0
    %264 = vmatprep.subr.mxu0 0.0
    %265 = vmatpush1.msra.mxu0 0.0
    %266 = vmatprep.subr.mxu0 0.0
    %267 = vmatpush1.msra.mxu0 0.0
    %268 = vmatprep.subr.mxu0 0.0
    %269 = vmatpush1.msra.mxu0 0.0
    %270 = vmatprep.subr.mxu0 0.0
    %271 = vmatpush1.msra.mxu0 0.0
    %272 = vmatprep.subr.mxu0 0.0
    %273 = vmatpush1.msra.mxu0 0.0
    %274 = vmatprep.subr.mxu0 0.0
    %275 = vmatpush1.msra.mxu0 0.0
    %276 = vmatprep.subr.mxu0 0.0
    %277 = vmatpush1.msra.mxu0 0.0
    %278 = vmatprep.subr.mxu0 0.0
    %279 = vmatpush1.msra.mxu0 0.0
    %280 = vmatprep.subr.mxu0 0.0
    %281 = vmatpush1.msra.mxu0 0.0
    %282 = vmatprep.subr.mxu0 0.0
    %283 = vmatpush1.msra.mxu0 0.0
    %284 = vmatprep.subr.mxu0 0.0
    %285 = vmatpush1.msra.mxu0 0.0
    %286 = vmatprep.subr.mxu0 0.0
    %287 = vmatpush1.msra.mxu0 0.0
    %288 = vmatprep.subr.mxu0 0.0
    %289 = vmatpush1.msra.mxu0 0.0
    %290 = vmatprep.mubr.f32.mxu0 0.0
    %291 = vmatmul.mubr.f32.gmra.mrb[0].mxu0 %v193
    %v292 = vpop.f32.mrb[0].mxu0
    %v293 = vadd.f32 0.0, %v292
    %v294 = vpop.f32.mrb[0].mxu0
    %v295 = vadd.f32 0.0, %v294
    %296 = vdwg.mxu0
    %v298 = vcombine.high %v293, %v293
    %v300 = vunpack.c.l.s4 1966171168
    %v301 = vunpack.c.0.s8 %v300
    %v302 = vlaneseq
    %v303 = vshrl.u32 %v302, 7
    %v304 = vsub.s32 %v301, %v303
    %v305 = vrot.slane %v293, %v304
    %v307 = vunpack.c.l.s4 1966171168
    %v308 = vunpack.c.0.s8 %v307
    %v309 = vlaneseq
    %v310 = vshrl.u32 %v309, 7
    %v311 = vsub.s32 %v308, %v310
    %v312 = vrot.slane %v298, %v311
    %v313 = vcombine.high %v305, %v305
    %v314 = vcombine.high %v312, %v312
    %v316 = vunpack.c.l.s4 1966171168
    %v317 = vunpack.c.0.s8 %v316
    %v318 = vlaneseq
    %v319 = vshrl.u32 %v318, 7
    %v320 = vsub.s32 %v317, %v319
    %v321 = vrot.slane %v305, %v320
    %v323 = vunpack.c.l.s4 1966171168
    %v324 = vunpack.c.0.s8 %v323
    %v325 = vlaneseq
    %v326 = vshrl.u32 %v325, 7
    %v327 = vsub.s32 %v324, %v326
    %v328 = vrot.slane %v312, %v327
    %v330 = vunpack.c.l.s4 1966171168
    %v331 = vunpack.c.0.s8 %v330
    %v332 = vlaneseq
    %v333 = vshrl.u32 %v332, 7
    %v334 = vsub.s32 %v331, %v333
    %v335 = vrot.slane %v313, %v334
    %v337 = vunpack.c.l.s4 1966171168
    %v338 = vunpack.c.0.s8 %v337
    %v339 = vlaneseq
    %v340 = vshrl.u32 %v339, 7
    %v341 = vsub.s32 %v338, %v340
    %v342 = vrot.slane %v314, %v341
    %v343 = vcombine.high %v321, %v321
    %v344 = vcombine.high %v328, %v328
    %v345 = vcombine.high %v335, %v335
    %v346 = vcombine.high %v342, %v342
    %355 = vmatprep.subr.mxu0 0.0
    %356 = vmatpush1.xpose.msra.mxu0 %v65
    %357 = vmatprep.subr.mxu0 0.0
    %358 = vmatpush1.xpose.msra.mxu0 %v66
    %359 = vmatprep.subr.mxu0 0.0
    %360 = vmatpush1.xpose.msra.mxu0 %v67
    %361 = vmatprep.subr.mxu0 0.0
    %362 = vmatpush1.xpose.msra.mxu0 %v68
    %363 = vmatprep.subr.mxu0 0.0
    %364 = vmatpush1.xpose.msra.mxu0 %v69
    %365 = vmatprep.subr.mxu0 0.0
    %366 = vmatpush1.xpose.msra.mxu0 %v70
    %367 = vmatprep.subr.mxu0 0.0
    %368 = vmatpush1.xpose.msra.mxu0 %v71
    %369 = vmatprep.subr.mxu0 0.0
    %370 = vmatpush1.xpose.msra.mxu0 %v72
    %371 = vmatprep.subr.mxu0 0.0
    %372 = vmatpush1.xpose.msra.mxu0 %v73
    %373 = vmatprep.subr.mxu0 0.0
    %374 = vmatpush1.xpose.msra.mxu0 %v74
    %375 = vmatprep.subr.mxu0 0.0
    %376 = vmatpush1.xpose.msra.mxu0 %v75
    %377 = vmatprep.subr.mxu0 0.0
    %378 = vmatpush1.xpose.msra.mxu0 %v76
    %379 = vmatprep.subr.mxu0 0.0
    %380 = vmatpush1.xpose.msra.mxu0 %v77
    %381 = vmatprep.subr.mxu0 0.0
    %382 = vmatpush1.xpose.msra.mxu0 %v78
    %383 = vmatprep.subr.mxu0 0.0
    %384 = vmatpush1.xpose.msra.mxu0 %v79
    %385 = vmatprep.subr.mxu0 0.0
    %386 = vmatpush1.xpose.msra.mxu0 %v80
    %387 = vmatprep.subr.mxu0 0.0
    %388 = vmatpush1.xpose.msra.mxu0 0.0
    %389 = vmatprep.subr.mxu0 0.0
    %390 = vmatpush1.xpose.msra.mxu0 0.0
    %391 = vmatprep.subr.mxu0 0.0
    %392 = vmatpush1.xpose.msra.mxu0 0.0
    %393 = vmatprep.subr.mxu0 0.0
    %394 = vmatpush1.xpose.msra.mxu0 0.0
    %395 = vmatprep.subr.mxu0 0.0
    %396 = vmatpush1.xpose.msra.mxu0 0.0
    %397 = vmatprep.subr.mxu0 0.0
    %398 = vmatpush1.xpose.msra.mxu0 0.0
    %399 = vmatprep.subr.mxu0 0.0
    %400 = vmatpush1.xpose.msra.mxu0 0.0
    %401 = vmatprep.subr.mxu0 0.0
    %402 = vmatpush1.xpose.msra.mxu0 0.0
    %403 = vmatprep.subr.mxu0 0.0
    %404 = vmatpush1.xpose.msra.mxu0 0.0
    %405 = vmatprep.subr.mxu0 0.0
    %406 = vmatpush1.xpose.msra.mxu0 0.0
    %407 = vmatprep.subr.mxu0 0.0
    %408 = vmatpush1.xpose.msra.mxu0 0.0
    %409 = vmatprep.subr.mxu0 0.0
    %410 = vmatpush1.xpose.msra.mxu0 0.0
    %411 = vmatprep.subr.mxu0 0.0
    %412 = vmatpush1.xpose.msra.mxu0 0.0
    %413 = vmatprep.subr.mxu0 0.0
    %414 = vmatpush1.xpose.msra.mxu0 0.0
    %415 = vmatprep.subr.mxu0 0.0
    %416 = vmatpush1.xpose.msra.mxu0 0.0
    %417 = vmatprep.subr.mxu0 0.0
    %418 = vmatpush1.xpose.msra.mxu0 0.0
    %419 = vmatprep.mubr.f32.mxu0 0.0
    %420 = vmatmul.mubr.f32.gmra.mrb[0].mxu0 %v321
    %v421 = vpop.f32.mrb[0].mxu0
    %v422 = vadd.f32 0.0, %v421
    %v423 = vpop.f32.mrb[0].mxu0
    %424 = vdwg.mxu0
    %425 = vmatprep.subr.mxu0 0.0
    %426 = vmatpush1.xpose.msra.mxu0 %v81
    %427 = vmatprep.subr.mxu0 0.0
    %428 = vmatpush1.xpose.msra.mxu0 %v82
    %429 = vmatprep.subr.mxu0 0.0
    %430 = vmatpush1.xpose.msra.mxu0 %v83
    %431 = vmatprep.subr.mxu0 0.0
    %432 = vmatpush1.xpose.msra.mxu0 %v84
    %433 = vmatprep.subr.mxu0 0.0
    %434 = vmatpush1.xpose.msra.mxu0 %v85
    %435 = vmatprep.subr.mxu0 0.0
    %436 = vmatpush1.xpose.msra.mxu0 %v86
    %437 = vmatprep.subr.mxu0 0.0
    %438 = vmatpush1.xpose.msra.mxu0 %v87
    %439 = vmatprep.subr.mxu0 0.0
    %440 = vmatpush1.xpose.msra.mxu0 %v88
    %441 = vmatprep.subr.mxu0 0.0
    %442 = vmatpush1.xpose.msra.mxu0 %v89
    %443 = vmatprep.subr.mxu0 0.0
    %444 = vmatpush1.xpose.msra.mxu0 %v90
    %445 = vmatprep.subr.mxu0 0.0
    %446 = vmatpush1.xpose.msra.mxu0 %v91
    %447 = vmatprep.subr.mxu0 0.0
    %448 = vmatpush1.xpose.msra.mxu0 %v92
    %449 = vmatprep.subr.mxu0 0.0
    %450 = vmatpush1.xpose.msra.mxu0 %v93
    %451 = vmatprep.subr.mxu0 0.0
    %452 = vmatpush1.xpose.msra.mxu0 %v94
    %453 = vmatprep.subr.mxu0 0.0
    %454 = vmatpush1.xpose.msra.mxu0 %v95
    %455 = vmatprep.subr.mxu0 0.0
    %456 = vmatpush1.xpose.msra.mxu0 %v96
    %457 = vmatprep.subr.mxu0 0.0
    %458 = vmatpush1.xpose.msra.mxu0 0.0
    %459 = vmatprep.subr.mxu0 0.0
    %460 = vmatpush1.xpose.msra.mxu0 0.0
    %461 = vmatprep.subr.mxu0 0.0
    %462 = vmatpush1.xpose.msra.mxu0 0.0
    %463 = vmatprep.subr.mxu0 0.0
    %464 = vmatpush1.xpose.msra.mxu0 0.0
    %465 = vmatprep.subr.mxu0 0.0
    %466 = vmatpush1.xpose.msra.mxu0 0.0
    %467 = vmatprep.subr.mxu0 0.0
    %468 = vmatpush1.xpose.msra.mxu0 0.0
    %469 = vmatprep.subr.mxu0 0.0
    %470 = vmatpush1.xpose.msra.mxu0 0.0
    %471 = vmatprep.subr.mxu0 0.0
    %472 = vmatpush1.xpose.msra.mxu0 0.0
    %473 = vmatprep.subr.mxu0 0.0
    %474 = vmatpush1.xpose.msra.mxu0 0.0
    %475 = vmatprep.subr.mxu0 0.0
    %476 = vmatpush1.xpose.msra.mxu0 0.0
    %477 = vmatprep.subr.mxu0 0.0
    %478 = vmatpush1.xpose.msra.mxu0 0.0
    %479 = vmatprep.subr.mxu0 0.0
    %480 = vmatpush1.xpose.msra.mxu0 0.0
    %481 = vmatprep.subr.mxu0 0.0
    %482 = vmatpush1.xpose.msra.mxu0 0.0
    %483 = vmatprep.subr.mxu0 0.0
    %484 = vmatpush1.xpose.msra.mxu0 0.0
    %485 = vmatprep.subr.mxu0 0.0
    %486 = vmatpush1.xpose.msra.mxu0 0.0
    %487 = vmatprep.subr.mxu0 0.0
    %488 = vmatpush1.xpose.msra.mxu0 0.0
    %489 = vmatprep.mubr.f32.mxu0 0.0
    %490 = vmatmul.mubr.f32.gmra.mrb[0].mxu0 %v335
    %v491 = vpop.f32.mrb[0].mxu0
    %v492 = vadd.f32 0.0, %v491
    %v493 = vpop.f32.mrb[0].mxu0
    %494 = vdwg.mxu0
    %495 = vmatprep.subr.mxu0 0.0
    %496 = vmatpush1.xpose.msra.mxu0 %v97
    %497 = vmatprep.subr.mxu0 0.0
    %498 = vmatpush1.xpose.msra.mxu0 %v98
    %499 = vmatprep.subr.mxu0 0.0
    %500 = vmatpush1.xpose.msra.mxu0 %v99
    %501 = vmatprep.subr.mxu0 0.0
    %502 = vmatpush1.xpose.msra.mxu0 %v100
    %503 = vmatprep.subr.mxu0 0.0
    %504 = vmatpush1.xpose.msra.mxu0 %v101
    %505 = vmatprep.subr.mxu0 0.0
    %506 = vmatpush1.xpose.msra.mxu0 %v102
    %507 = vmatprep.subr.mxu0 0.0
    %508 = vmatpush1.xpose.msra.mxu0 %v103
    %509 = vmatprep.subr.mxu0 0.0
    %510 = vmatpush1.xpose.msra.mxu0 %v104
    %511 = vmatprep.subr.mxu0 0.0
    %512 = vmatpush1.xpose.msra.mxu0 %v105
    %513 = vmatprep.subr.mxu0 0.0
    %514 = vmatpush1.xpose.msra.mxu0 %v106
    %515 = vmatprep.subr.mxu0 0.0
    %516 = vmatpush1.xpose.msra.mxu0 %v107
    %517 = vmatprep.subr.mxu0 0.0
    %518 = vmatpush1.xpose.msra.mxu0 %v108
    %519 = vmatprep.subr.mxu0 0.0
    %520 = vmatpush1.xpose.msra.mxu0 %v109
    %521 = vmatprep.subr.mxu0 0.0
    %522 = vmatpush1.xpose.msra.mxu0 %v110
    %523 = vmatprep.subr.mxu0 0.0
    %524 = vmatpush1.xpose.msra.mxu0 %v111
    %525 = vmatprep.subr.mxu0 0.0
    %526 = vmatpush1.xpose.msra.mxu0 %v112
    %527 = vmatprep.subr.mxu0 0.0
    %528 = vmatpush1.xpose.msra.mxu0 0.0
    %529 = vmatprep.subr.mxu0 0.0
    %530 = vmatpush1.xpose.msra.mxu0 0.0
    %531 = vmatprep.subr.mxu0 0.0
    %532 = vmatpush1.xpose.msra.mxu0 0.0
    %533 = vmatprep.subr.mxu0 0.0
    %534 = vmatpush1.xpose.msra.mxu0 0.0
    %535 = vmatprep.subr.mxu0 0.0
    %536 = vmatpush1.xpose.msra.mxu0 0.0
    %537 = vmatprep.subr.mxu0 0.0
    %538 = vmatpush1.xpose.msra.mxu0 0.0
    %539 = vmatprep.subr.mxu0 0.0
    %540 = vmatpush1.xpose.msra.mxu0 0.0
    %541 = vmatprep.subr.mxu0 0.0
    %542 = vmatpush1.xpose.msra.mxu0 0.0
    %543 = vmatprep.subr.mxu0 0.0
    %544 = vmatpush1.xpose.msra.mxu0 0.0
    %545 = vmatprep.subr.mxu0 0.0
    %546 = vmatpush1.xpose.msra.mxu0 0.0
    %547 = vmatprep.subr.mxu0 0.0
    %548 = vmatpush1.xpose.msra.mxu0 0.0
    %549 = vmatprep.subr.mxu0 0.0
    %550 = vmatpush1.xpose.msra.mxu0 0.0
    %551 = vmatprep.subr.mxu0 0.0
    %552 = vmatpush1.xpose.msra.mxu0 0.0
    %553 = vmatprep.subr.mxu0 0.0
    %554 = vmatpush1.xpose.msra.mxu0 0.0
    %555 = vmatprep.subr.mxu0 0.0
    %556 = vmatpush1.xpose.msra.mxu0 0.0
    %557 = vmatprep.subr.mxu0 0.0
    %558 = vmatpush1.xpose.msra.mxu0 0.0
    %559 = vmatprep.mubr.f32.mxu0 0.0
    %560 = vmatmul.mubr.f32.gmra.mrb[0].mxu0 %v343
    %v561 = vpop.f32.mrb[0].mxu0
    %v562 = vadd.f32 0.0, %v561
    %v563 = vpop.f32.mrb[0].mxu0
    %564 = vdwg.mxu0
    %565 = vmatprep.subr.mxu0 0.0
    %566 = vmatpush1.xpose.msra.mxu0 %v113
    %567 = vmatprep.subr.mxu0 0.0
    %568 = vmatpush1.xpose.msra.mxu0 %v114
    %569 = vmatprep.subr.mxu0 0.0
    %570 = vmatpush1.xpose.msra.mxu0 %v115
    %571 = vmatprep.subr.mxu0 0.0
    %572 = vmatpush1.xpose.msra.mxu0 %v116
    %573 = vmatprep.subr.mxu0 0.0
    %574 = vmatpush1.xpose.msra.mxu0 %v117
    %575 = vmatprep.subr.mxu0 0.0
    %576 = vmatpush1.xpose.msra.mxu0 %v118
    %577 = vmatprep.subr.mxu0 0.0
    %578 = vmatpush1.xpose.msra.mxu0 %v119
    %579 = vmatprep.subr.mxu0 0.0
    %580 = vmatpush1.xpose.msra.mxu0 %v120
    %581 = vmatprep.subr.mxu0 0.0
    %582 = vmatpush1.xpose.msra.mxu0 %v121
    %583 = vmatprep.subr.mxu0 0.0
    %584 = vmatpush1.xpose.msra.mxu0 %v122
    %585 = vmatprep.subr.mxu0 0.0
    %586 = vmatpush1.xpose.msra.mxu0 %v123
    %587 = vmatprep.subr.mxu0 0.0
    %588 = vmatpush1.xpose.msra.mxu0 %v124
    %589 = vmatprep.subr.mxu0 0.0
    %590 = vmatpush1.xpose.msra.mxu0 %v125
    %591 = vmatprep.subr.mxu0 0.0
    %592 = vmatpush1.xpose.msra.mxu0 %v126
    %593 = vmatprep.subr.mxu0 0.0
    %594 = vmatpush1.xpose.msra.mxu0 %v127
    %595 = vmatprep.subr.mxu0 0.0
    %596 = vmatpush1.xpose.msra.mxu0 %v128
    %597 = vmatprep.subr.mxu0 0.0
    %598 = vmatpush1.xpose.msra.mxu0 0.0
    %599 = vmatprep.subr.mxu0 0.0
    %600 = vmatpush1.xpose.msra.mxu0 0.0
    %601 = vmatprep.subr.mxu0 0.0
    %602 = vmatpush1.xpose.msra.mxu0 0.0
    %603 = vmatprep.subr.mxu0 0.0
    %604 = vmatpush1.xpose.msra.mxu0 0.0
    %605 = vmatprep.subr.mxu0 0.0
    %606 = vmatpush1.xpose.msra.mxu0 0.0
    %607 = vmatprep.subr.mxu0 0.0
    %608 = vmatpush1.xpose.msra.mxu0 0.0
    %609 = vmatprep.subr.mxu0 0.0
    %610 = vmatpush1.xpose.msra.mxu0 0.0
    %611 = vmatprep.subr.mxu0 0.0
    %612 = vmatpush1.xpose.msra.mxu0 0.0
    %613 = vmatprep.subr.mxu0 0.0
    %614 = vmatpush1.xpose.msra.mxu0 0.0
    %615 = vmatprep.subr.mxu0 0.0
    %616 = vmatpush1.xpose.msra.mxu0 0.0
    %617 = vmatprep.subr.mxu0 0.0
    %618 = vmatpush1.xpose.msra.mxu0 0.0
    %619 = vmatprep.subr.mxu0 0.0
    %620 = vmatpush1.xpose.msra.mxu0 0.0
    %621 = vmatprep.subr.mxu0 0.0
    %622 = vmatpush1.xpose.msra.mxu0 0.0
    %623 = vmatprep.subr.mxu0 0.0
    %624 = vmatpush1.xpose.msra.mxu0 0.0
    %625 = vmatprep.subr.mxu0 0.0
    %626 = vmatpush1.xpose.msra.mxu0 0.0
    %627 = vmatprep.subr.mxu0 0.0
    %628 = vmatpush1.xpose.msra.mxu0 0.0
    %629 = vmatprep.mubr.f32.mxu0 0.0
    %630 = vmatmul.mubr.f32.gmra.mrb[0].mxu0 %v345
    %v631 = vpop.f32.mrb[0].mxu0
    %v632 = vadd.f32 0.0, %v631
    %v633 = vpop.f32.mrb[0].mxu0
    %634 = vdwg.mxu0
    %635 = vmatprep.subr.mxu0 0.0
    %636 = vmatpush1.xpose.msra.mxu0 %v129
    %637 = vmatprep.subr.mxu0 0.0
    %638 = vmatpush1.xpose.msra.mxu0 %v130
    %639 = vmatprep.subr.mxu0 0.0
    %640 = vmatpush1.xpose.msra.mxu0 %v131
    %641 = vmatprep.subr.mxu0 0.0
    %642 = vmatpush1.xpose.msra.mxu0 %v132
    %643 = vmatprep.subr.mxu0 0.0
    %644 = vmatpush1.xpose.msra.mxu0 %v133
    %645 = vmatprep.subr.mxu0 0.0
    %646 = vmatpush1.xpose.msra.mxu0 %v134
    %647 = vmatprep.subr.mxu0 0.0
    %648 = vmatpush1.xpose.msra.mxu0 %v135
    %649 = vmatprep.subr.mxu0 0.0
    %650 = vmatpush1.xpose.msra.mxu0 %v136
    %651 = vmatprep.subr.mxu0 0.0
    %652 = vmatpush1.xpose.msra.mxu0 %v137
    %653 = vmatprep.subr.mxu0 0.0
    %654 = vmatpush1.xpose.msra.mxu0 %v138
    %655 = vmatprep.subr.mxu0 0.0
    %656 = vmatpush1.xpose.msra.mxu0 %v139
    %657 = vmatprep.subr.mxu0 0.0
    %658 = vmatpush1.xpose.msra.mxu0 %v140
    %659 = vmatprep.subr.mxu0 0.0
    %660 = vmatpush1.xpose.msra.mxu0 %v141
    %661 = vmatprep.subr.mxu0 0.0
    %662 = vmatpush1.xpose.msra.mxu0 %v142
    %663 = vmatprep.subr.mxu0 0.0
    %664 = vmatpush1.xpose.msra.mxu0 %v143
    %665 = vmatprep.subr.mxu0 0.0
    %666 = vmatpush1.xpose.msra.mxu0 %v144
    %667 = vmatprep.subr.mxu0 0.0
    %668 = vmatpush1.xpose.msra.mxu0 0.0
    %669 = vmatprep.subr.mxu0 0.0
    %670 = vmatpush1.xpose.msra.mxu0 0.0
    %671 = vmatprep.subr.mxu0 0.0
    %672 = vmatpush1.xpose.msra.mxu0 0.0
    %673 = vmatprep.subr.mxu0 0.0
    %674 = vmatpush1.xpose.msra.mxu0 0.0
    %675 = vmatprep.subr.mxu0 0.0
    %676 = vmatpush1.xpose.msra.mxu0 0.0
    %677 = vmatprep.subr.mxu0 0.0
    %678 = vmatpush1.xpose.msra.mxu0 0.0
    %679 = vmatprep.subr.mxu0 0.0
    %680 = vmatpush1.xpose.msra.mxu0 0.0
    %681 = vmatprep.subr.mxu0 0.0
    %682 = vmatpush1.xpose.msra.mxu0 0.0
    %683 = vmatprep.subr.mxu0 0.0
    %684 = vmatpush1.xpose.msra.mxu0 0.0
    %685 = vmatprep.subr.mxu0 0.0
    %686 = vmatpush1.xpose.msra.mxu0 0.0
    %687 = vmatprep.subr.mxu0 0.0
    %688 = vmatpush1.xpose.msra.mxu0 0.0
    %689 = vmatprep.subr.mxu0 0.0
    %690 = vmatpush1.xpose.msra.mxu0 0.0
    %691 = vmatprep.subr.mxu0 0.0
    %692 = vmatpush1.xpose.msra.mxu0 0.0
    %693 = vmatprep.subr.mxu0 0.0
    %694 = vmatpush1.xpose.msra.mxu0 0.0
    %695 = vmatprep.subr.mxu0 0.0
    %696 = vmatpush1.xpose.msra.mxu0 0.0
    %697 = vmatprep.subr.mxu0 0.0
    %698 = vmatpush1.xpose.msra.mxu0 0.0
    %699 = vmatprep.mubr.f32.mxu0 0.0
    %700 = vmatmul.mubr.f32.gmra.mrb[0].mxu0 %v328
    %v701 = vpop.f32.mrb[0].mxu0
    %v702 = vadd.f32 0.0, %v701
    %v703 = vpop.f32.mrb[0].mxu0
    %704 = vdwg.mxu0
    %705 = vmatprep.subr.mxu0 0.0
    %706 = vmatpush1.xpose.msra.mxu0 %v145
    %707 = vmatprep.subr.mxu0 0.0
    %708 = vmatpush1.xpose.msra.mxu0 %v146
    %709 = vmatprep.subr.mxu0 0.0
    %710 = vmatpush1.xpose.msra.mxu0 %v147
    %711 = vmatprep.subr.mxu0 0.0
    %712 = vmatpush1.xpose.msra.mxu0 %v148
    %713 = vmatprep.subr.mxu0 0.0
    %714 = vmatpush1.xpose.msra.mxu0 %v149
    %715 = vmatprep.subr.mxu0 0.0
    %716 = vmatpush1.xpose.msra.mxu0 %v150
    %717 = vmatprep.subr.mxu0 0.0
    %718 = vmatpush1.xpose.msra.mxu0 %v151
    %719 = vmatprep.subr.mxu0 0.0
    %720 = vmatpush1.xpose.msra.mxu0 %v152
    %721 = vmatprep.subr.mxu0 0.0
    %722 = vmatpush1.xpose.msra.mxu0 %v153
    %723 = vmatprep.subr.mxu0 0.0
    %724 = vmatpush1.xpose.msra.mxu0 %v154
    %725 = vmatprep.subr.mxu0 0.0
    %726 = vmatpush1.xpose.msra.mxu0 %v155
    %727 = vmatprep.subr.mxu0 0.0
    %728 = vmatpush1.xpose.msra.mxu0 %v156
    %729 = vmatprep.subr.mxu0 0.0
    %730 = vmatpush1.xpose.msra.mxu0 %v157
    %731 = vmatprep.subr.mxu0 0.0
    %732 = vmatpush1.xpose.msra.mxu0 %v158
    %733 = vmatprep.subr.mxu0 0.0
    %734 = vmatpush1.xpose.msra.mxu0 %v159
    %735 = vmatprep.subr.mxu0 0.0
    %736 = vmatpush1.xpose.msra.mxu0 %v160
    %737 = vmatprep.subr.mxu0 0.0
    %738 = vmatpush1.xpose.msra.mxu0 0.0
    %739 = vmatprep.subr.mxu0 0.0
    %740 = vmatpush1.xpose.msra.mxu0 0.0
    %741 = vmatprep.subr.mxu0 0.0
    %742 = vmatpush1.xpose.msra.mxu0 0.0
    %743 = vmatprep.subr.mxu0 0.0
    %744 = vmatpush1.xpose.msra.mxu0 0.0
    %745 = vmatprep.subr.mxu0 0.0
    %746 = vmatpush1.xpose.msra.mxu0 0.0
    %747 = vmatprep.subr.mxu0 0.0
    %748 = vmatpush1.xpose.msra.mxu0 0.0
    %749 = vmatprep.subr.mxu0 0.0
    %750 = vmatpush1.xpose.msra.mxu0 0.0
    %751 = vmatprep.subr.mxu0 0.0
    %752 = vmatpush1.xpose.msra.mxu0 0.0
    %753 = vmatprep.subr.mxu0 0.0
    %754 = vmatpush1.xpose.msra.mxu0 0.0
    %755 = vmatprep.subr.mxu0 0.0
    %756 = vmatpush1.xpose.msra.mxu0 0.0
    %757 = vmatprep.subr.mxu0 0.0
    %758 = vmatpush1.xpose.msra.mxu0 0.0
    %759 = vmatprep.subr.mxu0 0.0
    %760 = vmatpush1.xpose.msra.mxu0 0.0
    %761 = vmatprep.subr.mxu0 0.0
    %762 = vmatpush1.xpose.msra.mxu0 0.0
    %763 = vmatprep.subr.mxu0 0.0
    %764 = vmatpush1.xpose.msra.mxu0 0.0
    %765 = vmatprep.subr.mxu0 0.0
    %766 = vmatpush1.xpose.msra.mxu0 0.0
    %767 = vmatprep.subr.mxu0 0.0
    %768 = vmatpush1.xpose.msra.mxu0 0.0
    %769 = vmatprep.mubr.f32.mxu0 0.0
    %770 = vmatmul.mubr.f32.gmra.mrb[0].mxu0 %v342
    %v771 = vpop.f32.mrb[0].mxu0
    %v772 = vadd.f32 0.0, %v771
    %v773 = vpop.f32.mrb[0].mxu0
    %774 = vdwg.mxu0
    %775 = vmatprep.subr.mxu0 0.0
    %776 = vmatpush1.xpose.msra.mxu0 %v161
    %777 = vmatprep.subr.mxu0 0.0
    %778 = vmatpush1.xpose.msra.mxu0 %v162
    %779 = vmatprep.subr.mxu0 0.0
    %780 = vmatpush1.xpose.msra.mxu0 %v163
    %781 = vmatprep.subr.mxu0 0.0
    %782 = vmatpush1.xpose.msra.mxu0 %v164
    %783 = vmatprep.subr.mxu0 0.0
    %784 = vmatpush1.xpose.msra.mxu0 %v165
    %785 = vmatprep.subr.mxu0 0.0
    %786 = vmatpush1.xpose.msra.mxu0 %v166
    %787 = vmatprep.subr.mxu0 0.0
    %788 = vmatpush1.xpose.msra.mxu0 %v167
    %789 = vmatprep.subr.mxu0 0.0
    %790 = vmatpush1.xpose.msra.mxu0 %v168
    %791 = vmatprep.subr.mxu0 0.0
    %792 = vmatpush1.xpose.msra.mxu0 %v169
    %793 = vmatprep.subr.mxu0 0.0
    %794 = vmatpush1.xpose.msra.mxu0 %v170
    %795 = vmatprep.subr.mxu0 0.0
    %796 = vmatpush1.xpose.msra.mxu0 %v171
    %797 = vmatprep.subr.mxu0 0.0
    %798 = vmatpush1.xpose.msra.mxu0 %v172
    %799 = vmatprep.subr.mxu0 0.0
    %800 = vmatpush1.xpose.msra.mxu0 %v173
    %801 = vmatprep.subr.mxu0 0.0
    %802 = vmatpush1.xpose.msra.mxu0 %v174
    %803 = vmatprep.subr.mxu0 0.0
    %804 = vmatpush1.xpose.msra.mxu0 %v175
    %805 = vmatprep.subr.mxu0 0.0
    %806 = vmatpush1.xpose.msra.mxu0 %v176
    %807 = vmatprep.subr.mxu0 0.0
    %808 = vmatpush1.xpose.msra.mxu0 0.0
    %809 = vmatprep.subr.mxu0 0.0
    %810 = vmatpush1.xpose.msra.mxu0 0.0
    %811 = vmatprep.subr.mxu0 0.0
    %812 = vmatpush1.xpose.msra.mxu0 0.0
    %813 = vmatprep.subr.mxu0 0.0
    %814 = vmatpush1.xpose.msra.mxu0 0.0
    %815 = vmatprep.subr.mxu0 0.0
    %816 = vmatpush1.xpose.msra.mxu0 0.0
    %817 = vmatprep.subr.mxu0 0.0
    %818 = vmatpush1.xpose.msra.mxu0 0.0
    %819 = vmatprep.subr.mxu0 0.0
    %820 = vmatpush1.xpose.msra.mxu0 0.0
    %821 = vmatprep.subr.mxu0 0.0
    %822 = vmatpush1.xpose.msra.mxu0 0.0
    %823 = vmatprep.subr.mxu0 0.0
    %824 = vmatpush1.xpose.msra.mxu0 0.0
    %825 = vmatprep.subr.mxu0 0.0
    %826 = vmatpush1.xpose.msra.mxu0 0.0
    %827 = vmatprep.subr.mxu0 0.0
    %828 = vmatpush1.xpose.msra.mxu0 0.0
    %829 = vmatprep.subr.mxu0 0.0
    %830 = vmatpush1.xpose.msra.mxu0 0.0
    %831 = vmatprep.subr.mxu0 0.0
    %832 = vmatpush1.xpose.msra.mxu0 0.0
    %833 = vmatprep.subr.mxu0 0.0
    %834 = vmatpush1.xpose.msra.mxu0 0.0
    %835 = vmatprep.subr.mxu0 0.0
    %836 = vmatpush1.xpose.msra.mxu0 0.0
    %837 = vmatprep.subr.mxu0 0.0
    %838 = vmatpush1.xpose.msra.mxu0 0.0
    %839 = vmatprep.mubr.f32.mxu0 0.0
    %840 = vmatmul.mubr.f32.gmra.mrb[0].mxu0 %v344
    %v841 = vpop.f32.mrb[0].mxu0
    %v842 = vadd.f32 0.0, %v841
    %v843 = vpop.f32.mrb[0].mxu0
    %844 = vdwg.mxu0
    %845 = vmatprep.subr.mxu0 0.0
    %846 = vmatpush1.xpose.msra.mxu0 %v177
    %847 = vmatprep.subr.mxu0 0.0
    %848 = vmatpush1.xpose.msra.mxu0 %v178
    %849 = vmatprep.subr.mxu0 0.0
    %850 = vmatpush1.xpose.msra.mxu0 %v179
    %851 = vmatprep.subr.mxu0 0.0
    %852 = vmatpush1.xpose.msra.mxu0 %v180
    %853 = vmatprep.subr.mxu0 0.0
    %854 = vmatpush1.xpose.msra.mxu0 %v181
    %855 = vmatprep.subr.mxu0 0.0
    %856 = vmatpush1.xpose.msra.mxu0 %v182
    %857 = vmatprep.subr.mxu0 0.0
    %858 = vmatpush1.xpose.msra.mxu0 %v183
    %859 = vmatprep.subr.mxu0 0.0
    %860 = vmatpush1.xpose.msra.mxu0 %v184
    %861 = vmatprep.subr.mxu0 0.0
    %862 = vmatpush1.xpose.msra.mxu0 %v185
    %863 = vmatprep.subr.mxu0 0.0
    %864 = vmatpush1.xpose.msra.mxu0 %v186
    %865 = vmatprep.subr.mxu0 0.0
    %866 = vmatpush1.xpose.msra.mxu0 %v187
    %867 = vmatprep.subr.mxu0 0.0
    %868 = vmatpush1.xpose.msra.mxu0 %v188
    %869 = vmatprep.subr.mxu0 0.0
    %870 = vmatpush1.xpose.msra.mxu0 %v189
    %871 = vmatprep.subr.mxu0 0.0
    %872 = vmatpush1.xpose.msra.mxu0 %v190
    %873 = vmatprep.subr.mxu0 0.0
    %874 = vmatpush1.xpose.msra.mxu0 %v191
    %875 = vmatprep.subr.mxu0 0.0
    %876 = vmatpush1.xpose.msra.mxu0 %v192
    %877 = vmatprep.subr.mxu0 0.0
    %878 = vmatpush1.xpose.msra.mxu0 0.0
    %879 = vmatprep.subr.mxu0 0.0
    %880 = vmatpush1.xpose.msra.mxu0 0.0
    %881 = vmatprep.subr.mxu0 0.0
    %882 = vmatpush1.xpose.msra.mxu0 0.0
    %883 = vmatprep.subr.mxu0 0.0
    %884 = vmatpush1.xpose.msra.mxu0 0.0
    %885 = vmatprep.subr.mxu0 0.0
    %886 = vmatpush1.xpose.msra.mxu0 0.0
    %887 = vmatprep.subr.mxu0 0.0
    %888 = vmatpush1.xpose.msra.mxu0 0.0
    %889 = vmatprep.subr.mxu0 0.0
    %890 = vmatpush1.xpose.msra.mxu0 0.0
    %891 = vmatprep.subr.mxu0 0.0
    %892 = vmatpush1.xpose.msra.mxu0 0.0
    %893 = vmatprep.subr.mxu0 0.0
    %894 = vmatpush1.xpose.msra.mxu0 0.0
    %895 = vmatprep.subr.mxu0 0.0
    %896 = vmatpush1.xpose.msra.mxu0 0.0
    %897 = vmatprep.subr.mxu0 0.0
    %898 = vmatpush1.xpose.msra.mxu0 0.0
    %899 = vmatprep.subr.mxu0 0.0
    %900 = vmatpush1.xpose.msra.mxu0 0.0
    %901 = vmatprep.subr.mxu0 0.0
    %902 = vmatpush1.xpose.msra.mxu0 0.0
    %903 = vmatprep.subr.mxu0 0.0
    %904 = vmatpush1.xpose.msra.mxu0 0.0
    %905 = vmatprep.subr.mxu0 0.0
    %906 = vmatpush1.xpose.msra.mxu0 0.0
    %907 = vmatprep.subr.mxu0 0.0
    %908 = vmatpush1.xpose.msra.mxu0 0.0
    %909 = vmatprep.mubr.f32.mxu0 0.0
    %910 = vmatmul.mubr.f32.gmra.mrb[0].mxu0 %v346
    %v911 = vpop.f32.mrb[0].mxu0
    %v912 = vadd.f32 0.0, %v911
    %v913 = vpop.f32.mrb[0].mxu0
    %914 = vdwg.mxu0
    %v915 = vld [vmem:[%s0] sm:$0xff]
    %v916 = vsub.s32 16, %v915
    %v917 = vsub.s32 %v916, 4
    %vm918 = vcmp.gt.s32.totalorder %v917, 0
    %v919 = vsel %vm918, %v917, 0
    %v920 = vadd.s32 %v916, 4
    %vm921 = vcmp.lt.s32.totalorder %v920, 16
    %v922 = vsel %vm921, %v920, 16
    %v923 = vlaneseq
    %v924 = vand.u32 %v923, 127
    %925 = vset.pattern.permute.xlu0 0
    %926 = vperm.xlu0 %925, %v919
    %v927 = vpop.permute.xlu0 %926
    %vm928 = vcmp.lt.s32.totalorder %v924, %v927
    %929 = vset.pattern.permute.xlu0 0
    %930 = vperm.xlu0 %929, %v922
    %v931 = vpop.permute.xlu0 %930
    %vm932 = vcmp.gt.s32.totalorder %v924, %v931
    %vm933 = vmor %vm928, %vm932
    %vm934 = vcmp.ge.s32.totalorder %v924, 16
    %vm935 = vmor %vm933, %vm934
    %v944 = vrot.slane %v492, 7
    %vm945 = vcmask 1041409
    %v946 = vsel %vm945, %v944, %v422
    %v947 = vrot.slane %v562, 6
    %vm948 = vcmask 1042434
    %v949 = vsel %vm948, %v947, %v946
    %v950 = vrot.slane %v632, 5
    %vm951 = vcmask 1043459
    %v952 = vsel %vm951, %v950, %v949
    %v953 = vrot.slane %v702, 4
    %vm954 = vcmask 1044484
    %v955 = vsel %vm954, %v953, %v952
    %v956 = vrot.slane %v772, 3
    %vm957 = vcmask 1045509
    %v958 = vsel %vm957, %v956, %v955
    %v959 = vrot.slane %v842, 2
    %vm960 = vcmask 1046534
    %v961 = vsel %vm960, %v959, %v958
    %v962 = vrot.slane %v912, 1
    %vm963 = vcmask 1047559
    %v964 = vsel %vm963, %v962, %v961
    %v966 = vsel %vm935, -inf, %v964
    %967 = vmax.xlane.f32.xlu0 %v966
    %v968 = vpop.xlane.xlu0 %967
    %v969 = vsub.f32 %v966, %v968
    %v970 = vmul.f32 %v969, 1.442695
    %v971 = vpow.pop %v970
    %972 = vadd.xlane.f32.xlu0 %v971
    %v973 = vpop.xlane.xlu0 %972
    %v974 = vrcp.pop %v973
    %v975 = vmul.f32 %v971, %v974
    %976 = vset.pattern.permute.xlu0 0
    %977 = vperm.xlu0 %976, %v916
    %v978 = vpop.permute.xlu0 %977
    %v979 = vsub.s32 %v924, %v978
    %v980 = vcvt.s32.f32 %v979
    %v981 = vmul.f32 %v980, %v980
    %v982 = vmin.f32 %v981, 100.0
    %v983 = vsub.f32 0.0, %v982
    %v984 = vrcp.pop 8.0
    %v985 = vmul.f32 %v983, %v984
    %v986 = vmul.f32 %v985, 1.442695
    %v987 = vpow.pop %v986
    %v988 = vmul.f32 %v975, %v987
    %v990 = vcombine.high %v988, %v988
    %v992 = vunpack.c.l.s4 1966171168
    %v993 = vunpack.c.0.s8 %v992
    %v994 = vlaneseq
    %v995 = vshrl.u32 %v994, 7
    %v996 = vsub.s32 %v993, %v995
    %v997 = vrot.slane %v988, %v996
    %v999 = vunpack.c.l.s4 1966171168
    %v1000 = vunpack.c.0.s8 %v999
    %v1001 = vlaneseq
    %v1002 = vshrl.u32 %v1001, 7
    %v1003 = vsub.s32 %v1000, %v1002
    %v1004 = vrot.slane %v990, %v1003
    %v1005 = vcombine.high %v997, %v997
    %v1006 = vcombine.high %v1004, %v1004
    %v1008 = vunpack.c.l.s4 1966171168
    %v1009 = vunpack.c.0.s8 %v1008
    %v1010 = vlaneseq
    %v1011 = vshrl.u32 %v1010, 7
    %v1012 = vsub.s32 %v1009, %v1011
    %v1013 = vrot.slane %v997, %v1012
    %v1015 = vunpack.c.l.s4 1966171168
    %v1016 = vunpack.c.0.s8 %v1015
    %v1017 = vlaneseq
    %v1018 = vshrl.u32 %v1017, 7
    %v1019 = vsub.s32 %v1016, %v1018
    %v1020 = vrot.slane %v1004, %v1019
    %v1022 = vunpack.c.l.s4 1966171168
    %v1023 = vunpack.c.0.s8 %v1022
    %v1024 = vlaneseq
    %v1025 = vshrl.u32 %v1024, 7
    %v1026 = vsub.s32 %v1023, %v1025
    %v1027 = vrot.slane %v1005, %v1026
    %v1029 = vunpack.c.l.s4 1966171168
    %v1030 = vunpack.c.0.s8 %v1029
    %v1031 = vlaneseq
    %v1032 = vshrl.u32 %v1031, 7
    %v1033 = vsub.s32 %v1030, %v1032
    %v1034 = vrot.slane %v1006, %v1033
    %v1035 = vcombine.high %v1013, %v1013
    %v1036 = vcombine.high %v1020, %v1020
    %v1037 = vcombine.high %v1027, %v1027
    %v1038 = vcombine.high %v1034, %v1034
    %1047 = vmatprep.subr.mxu0 0.0
    %1048 = vmatpush1.msra.mxu0 %v65
    %1049 = vmatprep.subr.mxu0 0.0
    %1050 = vmatpush1.msra.mxu0 %v66
    %1051 = vmatprep.subr.mxu0 0.0
    %1052 = vmatpush1.msra.mxu0 %v67
    %1053 = vmatprep.subr.mxu0 0.0
    %1054 = vmatpush1.msra.mxu0 %v68
    %1055 = vmatprep.subr.mxu0 0.0
    %1056 = vmatpush1.msra.mxu0 %v69
    %1057 = vmatprep.subr.mxu0 0.0
    %1058 = vmatpush1.msra.mxu0 %v70
    %1059 = vmatprep.subr.mxu0 0.0
    %1060 = vmatpush1.msra.mxu0 %v71
    %1061 = vmatprep.subr.mxu0 0.0
    %1062 = vmatpush1.msra.mxu0 %v72
    %1063 = vmatprep.subr.mxu0 0.0
    %1064 = vmatpush1.msra.mxu0 %v73
    %1065 = vmatprep.subr.mxu0 0.0
    %1066 = vmatpush1.msra.mxu0 %v74
    %1067 = vmatprep.subr.mxu0 0.0
    %1068 = vmatpush1.msra.mxu0 %v75
    %1069 = vmatprep.subr.mxu0 0.0
    %1070 = vmatpush1.msra.mxu0 %v76
    %1071 = vmatprep.subr.mxu0 0.0
    %1072 = vmatpush1.msra.mxu0 %v77
    %1073 = vmatprep.subr.mxu0 0.0
    %1074 = vmatpush1.msra.mxu0 %v78
    %1075 = vmatprep.subr.mxu0 0.0
    %1076 = vmatpush1.msra.mxu0 %v79
    %1077 = vmatprep.subr.mxu0 0.0
    %1078 = vmatpush1.msra.mxu0 %v80
    %1079 = vmatprep.subr.mxu0 0.0
    %1080 = vmatpush1.msra.mxu0 0.0
    %1081 = vmatprep.subr.mxu0 0.0
    %1082 = vmatpush1.msra.mxu0 0.0
    %1083 = vmatprep.subr.mxu0 0.0
    %1084 = vmatpush1.msra.mxu0 0.0
    %1085 = vmatprep.subr.mxu0 0.0
    %1086 = vmatpush1.msra.mxu0 0.0
    %1087 = vmatprep.subr.mxu0 0.0
    %1088 = vmatpush1.msra.mxu0 0.0
    %1089 = vmatprep.subr.mxu0 0.0
    %1090 = vmatpush1.msra.mxu0 0.0
    %1091 = vmatprep.subr.mxu0 0.0
    %1092 = vmatpush1.msra.mxu0 0.0
    %1093 = vmatprep.subr.mxu0 0.0
    %1094 = vmatpush1.msra.mxu0 0.0
    %1095 = vmatprep.subr.mxu0 0.0
    %1096 = vmatpush1.msra.mxu0 0.0
    %1097 = vmatprep.subr.mxu0 0.0
    %1098 = vmatpush1.msra.mxu0 0.0
    %1099 = vmatprep.subr.mxu0 0.0
    %1100 = vmatpush1.msra.mxu0 0.0
    %1101 = vmatprep.subr.mxu0 0.0
    %1102 = vmatpush1.msra.mxu0 0.0
    %1103 = vmatprep.subr.mxu0 0.0
    %1104 = vmatpush1.msra.mxu0 0.0
    %1105 = vmatprep.subr.mxu0 0.0
    %1106 = vmatpush1.msra.mxu0 0.0
    %1107 = vmatprep.subr.mxu0 0.0
    %1108 = vmatpush1.msra.mxu0 0.0
    %1109 = vmatprep.subr.mxu0 0.0
    %1110 = vmatpush1.msra.mxu0 0.0
    %1111 = vmatprep.mubr.f32.mxu0 0.0
    %1112 = vmatmul.mubr.f32.gmra.mrb[0].mxu0 %v1013
    %v1113 = vpop.f32.mrb[0].mxu0
    %v1114 = vadd.f32 0.0, %v1113
    %v1115 = vpop.f32.mrb[0].mxu0
    %1116 = vdwg.mxu0
    %1117 = vmatprep.subr.mxu0 0.0
    %1118 = vmatpush1.msra.mxu0 %v81
    %1119 = vmatprep.subr.mxu0 0.0
    %1120 = vmatpush1.msra.mxu0 %v82
    %1121 = vmatprep.subr.mxu0 0.0
    %1122 = vmatpush1.msra.mxu0 %v83
    %1123 = vmatprep.subr.mxu0 0.0
    %1124 = vmatpush1.msra.mxu0 %v84
    %1125 = vmatprep.subr.mxu0 0.0
    %1126 = vmatpush1.msra.mxu0 %v85
    %1127 = vmatprep.subr.mxu0 0.0
    %1128 = vmatpush1.msra.mxu0 %v86
    %1129 = vmatprep.subr.mxu0 0.0
    %1130 = vmatpush1.msra.mxu0 %v87
    %1131 = vmatprep.subr.mxu0 0.0
    %1132 = vmatpush1.msra.mxu0 %v88
    %1133 = vmatprep.subr.mxu0 0.0
    %1134 = vmatpush1.msra.mxu0 %v89
    %1135 = vmatprep.subr.mxu0 0.0
    %1136 = vmatpush1.msra.mxu0 %v90
    %1137 = vmatprep.subr.mxu0 0.0
    %1138 = vmatpush1.msra.mxu0 %v91
    %1139 = vmatprep.subr.mxu0 0.0
    %1140 = vmatpush1.msra.mxu0 %v92
    %1141 = vmatprep.subr.mxu0 0.0
    %1142 = vmatpush1.msra.mxu0 %v93
    %1143 = vmatprep.subr.mxu0 0.0
    %1144 = vmatpush1.msra.mxu0 %v94
    %1145 = vmatprep.subr.mxu0 0.0
    %1146 = vmatpush1.msra.mxu0 %v95
    %1147 = vmatprep.subr.mxu0 0.0
    %1148 = vmatpush1.msra.mxu0 %v96
    %1149 = vmatprep.subr.mxu0 0.0
    %1150 = vmatpush1.msra.mxu0 0.0
    %1151 = vmatprep.subr.mxu0 0.0
    %1152 = vmatpush1.msra.mxu0 0.0
    %1153 = vmatprep.subr.mxu0 0.0
    %1154 = vmatpush1.msra.mxu0 0.0
    %1155 = vmatprep.subr.mxu0 0.0
    %1156 = vmatpush1.msra.mxu0 0.0
    %1157 = vmatprep.subr.mxu0 0.0
    %1158 = vmatpush1.msra.mxu0 0.0
    %1159 = vmatprep.subr.mxu0 0.0
    %1160 = vmatpush1.msra.mxu0 0.0
    %1161 = vmatprep.subr.mxu0 0.0
    %1162 = vmatpush1.msra.mxu0 0.0
    %1163 = vmatprep.subr.mxu0 0.0
    %1164 = vmatpush1.msra.mxu0 0.0
    %1165 = vmatprep.subr.mxu0 0.0
    %1166 = vmatpush1.msra.mxu0 0.0
    %1167 = vmatprep.subr.mxu0 0.0
    %1168 = vmatpush1.msra.mxu0 0.0
    %1169 = vmatprep.subr.mxu0 0.0
    %1170 = vmatpush1.msra.mxu0 0.0
    %1171 = vmatprep.subr.mxu0 0.0
    %1172 = vmatpush1.msra.mxu0 0.0
    %1173 = vmatprep.subr.mxu0 0.0
    %1174 = vmatpush1.msra.mxu0 0.0
    %1175 = vmatprep.subr.mxu0 0.0
    %1176 = vmatpush1.msra.mxu0 0.0
    %1177 = vmatprep.subr.mxu0 0.0
    %1178 = vmatpush1.msra.mxu0 0.0
    %1179 = vmatprep.subr.mxu0 0.0
    %1180 = vmatpush1.msra.mxu0 0.0
    %1181 = vmatprep.mubr.f32.mxu0 0.0
    %1182 = vmatmul.mubr.f32.gmra.mrb[0].mxu0 %v1027
    %v1183 = vpop.f32.mrb[0].mxu0
    %v1184 = vadd.f32 0.0, %v1183
    %v1185 = vpop.f32.mrb[0].mxu0
    %1186 = vdwg.mxu0
    %1187 = vmatprep.subr.mxu0 0.0
    %1188 = vmatpush1.msra.mxu0 %v97
    %1189 = vmatprep.subr.mxu0 0.0
    %1190 = vmatpush1.msra.mxu0 %v98
    %1191 = vmatprep.subr.mxu0 0.0
    %1192 = vmatpush1.msra.mxu0 %v99
    %1193 = vmatprep.subr.mxu0 0.0
    %1194 = vmatpush1.msra.mxu0 %v100
    %1195 = vmatprep.subr.mxu0 0.0
    %1196 = vmatpush1.msra.mxu0 %v101
    %1197 = vmatprep.subr.mxu0 0.0
    %1198 = vmatpush1.msra.mxu0 %v102
    %1199 = vmatprep.subr.mxu0 0.0
    %1200 = vmatpush1.msra.mxu0 %v103
    %1201 = vmatprep.subr.mxu0 0.0
    %1202 = vmatpush1.msra.mxu0 %v104
    %1203 = vmatprep.subr.mxu0 0.0
    %1204 = vmatpush1.msra.mxu0 %v105
    %1205 = vmatprep.subr.mxu0 0.0
    %1206 = vmatpush1.msra.mxu0 %v106
    %1207 = vmatprep.subr.mxu0 0.0
    %1208 = vmatpush1.msra.mxu0 %v107
    %1209 = vmatprep.subr.mxu0 0.0
    %1210 = vmatpush1.msra.mxu0 %v108
    %1211 = vmatprep.subr.mxu0 0.0
    %1212 = vmatpush1.msra.mxu0 %v109
    %1213 = vmatprep.subr.mxu0 0.0
    %1214 = vmatpush1.msra.mxu0 %v110
    %1215 = vmatprep.subr.mxu0 0.0
    %1216 = vmatpush1.msra.mxu0 %v111
    %1217 = vmatprep.subr.mxu0 0.0
    %1218 = vmatpush1.msra.mxu0 %v112
    %1219 = vmatprep.subr.mxu0 0.0
    %1220 = vmatpush1.msra.mxu0 0.0
    %1221 = vmatprep.subr.mxu0 0.0
    %1222 = vmatpush1.msra.mxu0 0.0
    %1223 = vmatprep.subr.mxu0 0.0
    %1224 = vmatpush1.msra.mxu0 0.0
    %1225 = vmatprep.subr.mxu0 0.0
    %1226 = vmatpush1.msra.mxu0 0.0
    %1227 = vmatprep.subr.mxu0 0.0
    %1228 = vmatpush1.msra.mxu0 0.0
    %1229 = vmatprep.subr.mxu0 0.0
    %1230 = vmatpush1.msra.mxu0 0.0
    %1231 = vmatprep.subr.mxu0 0.0
    %1232 = vmatpush1.msra.mxu0 0.0
    %1233 = vmatprep.subr.mxu0 0.0
    %1234 = vmatpush1.msra.mxu0 0.0
    %1235 = vmatprep.subr.mxu0 0.0
    %1236 = vmatpush1.msra.mxu0 0.0
    %1237 = vmatprep.subr.mxu0 0.0
    %1238 = vmatpush1.msra.mxu0 0.0
    %1239 = vmatprep.subr.mxu0 0.0
    %1240 = vmatpush1.msra.mxu0 0.0
    %1241 = vmatprep.subr.mxu0 0.0
    %1242 = vmatpush1.msra.mxu0 0.0
    %1243 = vmatprep.subr.mxu0 0.0
    %1244 = vmatpush1.msra.mxu0 0.0
    %1245 = vmatprep.subr.mxu0 0.0
    %1246 = vmatpush1.msra.mxu0 0.0
    %1247 = vmatprep.subr.mxu0 0.0
    %1248 = vmatpush1.msra.mxu0 0.0
    %1249 = vmatprep.subr.mxu0 0.0
    %1250 = vmatpush1.msra.mxu0 0.0
    %1251 = vmatprep.mubr.f32.mxu0 0.0
    %1252 = vmatmul.mubr.f32.gmra.mrb[0].mxu0 %v1035
    %v1253 = vpop.f32.mrb[0].mxu0
    %v1254 = vadd.f32 0.0, %v1253
    %v1255 = vpop.f32.mrb[0].mxu0
    %1256 = vdwg.mxu0
    %1257 = vmatprep.subr.mxu0 0.0
    %1258 = vmatpush1.msra.mxu0 %v113
    %1259 = vmatprep.subr.mxu0 0.0
    %1260 = vmatpush1.msra.mxu0 %v114
    %1261 = vmatprep.subr.mxu0 0.0
    %1262 = vmatpush1.msra.mxu0 %v115
    %1263 = vmatprep.subr.mxu0 0.0
    %1264 = vmatpush1.msra.mxu0 %v116
    %1265 = vmatprep.subr.mxu0 0.0
    %1266 = vmatpush1.msra.mxu0 %v117
    %1267 = vmatprep.subr.mxu0 0.0
    %1268 = vmatpush1.msra.mxu0 %v118
    %1269 = vmatprep.subr.mxu0 0.0
    %1270 = vmatpush1.msra.mxu0 %v119
    %1271 = vmatprep.subr.mxu0 0.0
    %1272 = vmatpush1.msra.mxu0 %v120
    %1273 = vmatprep.subr.mxu0 0.0
    %1274 = vmatpush1.msra.mxu0 %v121
    %1275 = vmatprep.subr.mxu0 0.0
    %1276 = vmatpush1.msra.mxu0 %v122
    %1277 = vmatprep.subr.mxu0 0.0
    %1278 = vmatpush1.msra.mxu0 %v123
    %1279 = vmatprep.subr.mxu0 0.0
    %1280 = vmatpush1.msra.mxu0 %v124
    %1281 = vmatprep.subr.mxu0 0.0
    %1282 = vmatpush1.msra.mxu0 %v125
    %1283 = vmatprep.subr.mxu0 0.0
    %1284 = vmatpush1.msra.mxu0 %v126
    %1285 = vmatprep.subr.mxu0 0.0
    %1286 = vmatpush1.msra.mxu0 %v127
    %1287 = vmatprep.subr.mxu0 0.0
    %1288 = vmatpush1.msra.mxu0 %v128
    %1289 = vmatprep.subr.mxu0 0.0
    %1290 = vmatpush1.msra.mxu0 0.0
    %1291 = vmatprep.subr.mxu0 0.0
    %1292 = vmatpush1.msra.mxu0 0.0
    %1293 = vmatprep.subr.mxu0 0.0
    %1294 = vmatpush1.msra.mxu0 0.0
    %1295 = vmatprep.subr.mxu0 0.0
    %1296 = vmatpush1.msra.mxu0 0.0
    %1297 = vmatprep.subr.mxu0 0.0
    %1298 = vmatpush1.msra.mxu0 0.0
    %1299 = vmatprep.subr.mxu0 0.0
    %1300 = vmatpush1.msra.mxu0 0.0
    %1301 = vmatprep.subr.mxu0 0.0
    %1302 = vmatpush1.msra.mxu0 0.0
    %1303 = vmatprep.subr.mxu0 0.0
    %1304 = vmatpush1.msra.mxu0 0.0
    %1305 = vmatprep.subr.mxu0 0.0
    %1306 = vmatpush1.msra.mxu0 0.0
    %1307 = vmatprep.subr.mxu0 0.0
    %1308 = vmatpush1.msra.mxu0 0.0
    %1309 = vmatprep.subr.mxu0 0.0
    %1310 = vmatpush1.msra.mxu0 0.0
    %1311 = vmatprep.subr.mxu0 0.0
    %1312 = vmatpush1.msra.mxu0 0.0
    %1313 = vmatprep.subr.mxu0 0.0
    %1314 = vmatpush1.msra.mxu0 0.0
    %1315 = vmatprep.subr.mxu0 0.0
    %1316 = vmatpush1.msra.mxu0 0.0
    %1317 = vmatprep.subr.mxu0 0.0
    %1318 = vmatpush1.msra.mxu0 0.0
    %1319 = vmatprep.subr.mxu0 0.0
    %1320 = vmatpush1.msra.mxu0 0.0
    %1321 = vmatprep.mubr.f32.mxu0 0.0
    %1322 = vmatmul.mubr.f32.gmra.mrb[0].mxu0 %v1037
    %v1323 = vpop.f32.mrb[0].mxu0
    %v1324 = vadd.f32 0.0, %v1323
    %v1325 = vpop.f32.mrb[0].mxu0
    %1326 = vdwg.mxu0
    %1327 = vmatprep.subr.mxu0 0.0
    %1328 = vmatpush1.msra.mxu0 %v129
    %1329 = vmatprep.subr.mxu0 0.0
    %1330 = vmatpush1.msra.mxu0 %v130
    %1331 = vmatprep.subr.mxu0 0.0
    %1332 = vmatpush1.msra.mxu0 %v131
    %1333 = vmatprep.subr.mxu0 0.0
    %1334 = vmatpush1.msra.mxu0 %v132
    %1335 = vmatprep.subr.mxu0 0.0
    %1336 = vmatpush1.msra.mxu0 %v133
    %1337 = vmatprep.subr.mxu0 0.0
    %1338 = vmatpush1.msra.mxu0 %v134
    %1339 = vmatprep.subr.mxu0 0.0
    %1340 = vmatpush1.msra.mxu0 %v135
    %1341 = vmatprep.subr.mxu0 0.0
    %1342 = vmatpush1.msra.mxu0 %v136
    %1343 = vmatprep.subr.mxu0 0.0
    %1344 = vmatpush1.msra.mxu0 %v137
    %1345 = vmatprep.subr.mxu0 0.0
    %1346 = vmatpush1.msra.mxu0 %v138
    %1347 = vmatprep.subr.mxu0 0.0
    %1348 = vmatpush1.msra.mxu0 %v139
    %1349 = vmatprep.subr.mxu0 0.0
    %1350 = vmatpush1.msra.mxu0 %v140
    %1351 = vmatprep.subr.mxu0 0.0
    %1352 = vmatpush1.msra.mxu0 %v141
    %1353 = vmatprep.subr.mxu0 0.0
    %1354 = vmatpush1.msra.mxu0 %v142
    %1355 = vmatprep.subr.mxu0 0.0
    %1356 = vmatpush1.msra.mxu0 %v143
    %1357 = vmatprep.subr.mxu0 0.0
    %1358 = vmatpush1.msra.mxu0 %v144
    %1359 = vmatprep.subr.mxu0 0.0
    %1360 = vmatpush1.msra.mxu0 0.0
    %1361 = vmatprep.subr.mxu0 0.0
    %1362 = vmatpush1.msra.mxu0 0.0
    %1363 = vmatprep.subr.mxu0 0.0
    %1364 = vmatpush1.msra.mxu0 0.0
    %1365 = vmatprep.subr.mxu0 0.0
    %1366 = vmatpush1.msra.mxu0 0.0
    %1367 = vmatprep.subr.mxu0 0.0
    %1368 = vmatpush1.msra.mxu0 0.0
    %1369 = vmatprep.subr.mxu0 0.0
    %1370 = vmatpush1.msra.mxu0 0.0
    %1371 = vmatprep.subr.mxu0 0.0
    %1372 = vmatpush1.msra.mxu0 0.0
    %1373 = vmatprep.subr.mxu0 0.0
    %1374 = vmatpush1.msra.mxu0 0.0
    %1375 = vmatprep.subr.mxu0 0.0
    %1376 = vmatpush1.msra.mxu0 0.0
    %1377 = vmatprep.subr.mxu0 0.0
    %1378 = vmatpush1.msra.mxu0 0.0
    %1379 = vmatprep.subr.mxu0 0.0
    %1380 = vmatpush1.msra.mxu0 0.0
    %1381 = vmatprep.subr.mxu0 0.0
    %1382 = vmatpush1.msra.mxu0 0.0
    %1383 = vmatprep.subr.mxu0 0.0
    %1384 = vmatpush1.msra.mxu0 0.0
    %1385 = vmatprep.subr.mxu0 0.0
    %1386 = vmatpush1.msra.mxu0 0.0
    %1387 = vmatprep.subr.mxu0 0.0
    %1388 = vmatpush1.msra.mxu0 0.0
    %1389 = vmatprep.subr.mxu0 0.0
    %1390 = vmatpush1.msra.mxu0 0.0
    %1391 = vmatprep.mubr.f32.mxu0 0.0
    %1392 = vmatmul.mubr.f32.gmra.mrb[0].mxu0 %v1020
    %v1393 = vpop.f32.mrb[0].mxu0
    %v1394 = vadd.f32 0.0, %v1393
    %v1395 = vpop.f32.mrb[0].mxu0
    %1396 = vdwg.mxu0
    %1397 = vmatprep.subr.mxu0 0.0
    %1398 = vmatpush1.msra.mxu0 %v145
    %1399 = vmatprep.subr.mxu0 0.0
    %1400 = vmatpush1.msra.mxu0 %v146
    %1401 = vmatprep.subr.mxu0 0.0
    %1402 = vmatpush1.msra.mxu0 %v147
    %1403 = vmatprep.subr.mxu0 0.0
    %1404 = vmatpush1.msra.mxu0 %v148
    %1405 = vmatprep.subr.mxu0 0.0
    %1406 = vmatpush1.msra.mxu0 %v149
    %1407 = vmatprep.subr.mxu0 0.0
    %1408 = vmatpush1.msra.mxu0 %v150
    %1409 = vmatprep.subr.mxu0 0.0
    %1410 = vmatpush1.msra.mxu0 %v151
    %1411 = vmatprep.subr.mxu0 0.0
    %1412 = vmatpush1.msra.mxu0 %v152
    %1413 = vmatprep.subr.mxu0 0.0
    %1414 = vmatpush1.msra.mxu0 %v153
    %1415 = vmatprep.subr.mxu0 0.0
    %1416 = vmatpush1.msra.mxu0 %v154
    %1417 = vmatprep.subr.mxu0 0.0
    %1418 = vmatpush1.msra.mxu0 %v155
    %1419 = vmatprep.subr.mxu0 0.0
    %1420 = vmatpush1.msra.mxu0 %v156
    %1421 = vmatprep.subr.mxu0 0.0
    %1422 = vmatpush1.msra.mxu0 %v157
    %1423 = vmatprep.subr.mxu0 0.0
    %1424 = vmatpush1.msra.mxu0 %v158
    %1425 = vmatprep.subr.mxu0 0.0
    %1426 = vmatpush1.msra.mxu0 %v159
    %1427 = vmatprep.subr.mxu0 0.0
    %1428 = vmatpush1.msra.mxu0 %v160
    %1429 = vmatprep.subr.mxu0 0.0
    %1430 = vmatpush1.msra.mxu0 0.0
    %1431 = vmatprep.subr.mxu0 0.0
    %1432 = vmatpush1.msra.mxu0 0.0
    %1433 = vmatprep.subr.mxu0 0.0
    %1434 = vmatpush1.msra.mxu0 0.0
    %1435 = vmatprep.subr.mxu0 0.0
    %1436 = vmatpush1.msra.mxu0 0.0
    %1437 = vmatprep.subr.mxu0 0.0
    %1438 = vmatpush1.msra.mxu0 0.0
    %1439 = vmatprep.subr.mxu0 0.0
    %1440 = vmatpush1.msra.mxu0 0.0
    %1441 = vmatprep.subr.mxu0 0.0
    %1442 = vmatpush1.msra.mxu0 0.0
    %1443 = vmatprep.subr.mxu0 0.0
    %1444 = vmatpush1.msra.mxu0 0.0
    %1445 = vmatprep.subr.mxu0 0.0
    %1446 = vmatpush1.msra.mxu0 0.0
    %1447 = vmatprep.subr.mxu0 0.0
    %1448 = vmatpush1.msra.mxu0 0.0
    %1449 = vmatprep.subr.mxu0 0.0
    %1450 = vmatpush1.msra.mxu0 0.0
    %1451 = vmatprep.subr.mxu0 0.0
    %1452 = vmatpush1.msra.mxu0 0.0
    %1453 = vmatprep.subr.mxu0 0.0
    %1454 = vmatpush1.msra.mxu0 0.0
    %1455 = vmatprep.subr.mxu0 0.0
    %1456 = vmatpush1.msra.mxu0 0.0
    %1457 = vmatprep.subr.mxu0 0.0
    %1458 = vmatpush1.msra.mxu0 0.0
    %1459 = vmatprep.subr.mxu0 0.0
    %1460 = vmatpush1.msra.mxu0 0.0
    %1461 = vmatprep.mubr.f32.mxu0 0.0
    %1462 = vmatmul.mubr.f32.gmra.mrb[0].mxu0 %v1034
    %v1463 = vpop.f32.mrb[0].mxu0
    %v1464 = vadd.f32 0.0, %v1463
    %v1465 = vpop.f32.mrb[0].mxu0
    %1466 = vdwg.mxu0
    %1467 = vmatprep.subr.mxu0 0.0
    %1468 = vmatpush1.msra.mxu0 %v161
    %1469 = vmatprep.subr.mxu0 0.0
    %1470 = vmatpush1.msra.mxu0 %v162
    %1471 = vmatprep.subr.mxu0 0.0
    %1472 = vmatpush1.msra.mxu0 %v163
    %1473 = vmatprep.subr.mxu0 0.0
    %1474 = vmatpush1.msra.mxu0 %v164
    %1475 = vmatprep.subr.mxu0 0.0
    %1476 = vmatpush1.msra.mxu0 %v165
    %1477 = vmatprep.subr.mxu0 0.0
    %1478 = vmatpush1.msra.mxu0 %v166
    %1479 = vmatprep.subr.mxu0 0.0
    %1480 = vmatpush1.msra.mxu0 %v167
    %1481 = vmatprep.subr.mxu0 0.0
    %1482 = vmatpush1.msra.mxu0 %v168
    %1483 = vmatprep.subr.mxu0 0.0
    %1484 = vmatpush1.msra.mxu0 %v169
    %1485 = vmatprep.subr.mxu0 0.0
    %1486 = vmatpush1.msra.mxu0 %v170
    %1487 = vmatprep.subr.mxu0 0.0
    %1488 = vmatpush1.msra.mxu0 %v171
    %1489 = vmatprep.subr.mxu0 0.0
    %1490 = vmatpush1.msra.mxu0 %v172
    %1491 = vmatprep.subr.mxu0 0.0
    %1492 = vmatpush1.msra.mxu0 %v173
    %1493 = vmatprep.subr.mxu0 0.0
    %1494 = vmatpush1.msra.mxu0 %v174
    %1495 = vmatprep.subr.mxu0 0.0
    %1496 = vmatpush1.msra.mxu0 %v175
    %1497 = vmatprep.subr.mxu0 0.0
    %1498 = vmatpush1.msra.mxu0 %v176
    %1499 = vmatprep.subr.mxu0 0.0
    %1500 = vmatpush1.msra.mxu0 0.0
    %1501 = vmatprep.subr.mxu0 0.0
    %1502 = vmatpush1.msra.mxu0 0.0
    %1503 = vmatprep.subr.mxu0 0.0
    %1504 = vmatpush1.msra.mxu0 0.0
    %1505 = vmatprep.subr.mxu0 0.0
    %1506 = vmatpush1.msra.mxu0 0.0
    %1507 = vmatprep.subr.mxu0 0.0
    %1508 = vmatpush1.msra.mxu0 0.0
    %1509 = vmatprep.subr.mxu0 0.0
    %1510 = vmatpush1.msra.mxu0 0.0
    %1511 = vmatprep.subr.mxu0 0.0
    %1512 = vmatpush1.msra.mxu0 0.0
    %1513 = vmatprep.subr.mxu0 0.0
    %1514 = vmatpush1.msra.mxu0 0.0
    %1515 = vmatprep.subr.mxu0 0.0
    %1516 = vmatpush1.msra.mxu0 0.0
    %1517 = vmatprep.subr.mxu0 0.0
    %1518 = vmatpush1.msra.mxu0 0.0
    %1519 = vmatprep.subr.mxu0 0.0
    %1520 = vmatpush1.msra.mxu0 0.0
    %1521 = vmatprep.subr.mxu0 0.0
    %1522 = vmatpush1.msra.mxu0 0.0
    %1523 = vmatprep.subr.mxu0 0.0
    %1524 = vmatpush1.msra.mxu0 0.0
    %1525 = vmatprep.subr.mxu0 0.0
    %1526 = vmatpush1.msra.mxu0 0.0
    %1527 = vmatprep.subr.mxu0 0.0
    %1528 = vmatpush1.msra.mxu0 0.0
    %1529 = vmatprep.subr.mxu0 0.0
    %1530 = vmatpush1.msra.mxu0 0.0
    %1531 = vmatprep.mubr.f32.mxu0 0.0
    %1532 = vmatmul.mubr.f32.gmra.mrb[0].mxu0 %v1036
    %v1533 = vpop.f32.mrb[0].mxu0
    %v1534 = vadd.f32 0.0, %v1533
    %v1535 = vpop.f32.mrb[0].mxu0
    %1536 = vdwg.mxu0
    %1537 = vmatprep.subr.mxu0 0.0
    %1538 = vmatpush1.msra.mxu0 %v177
    %1539 = vmatprep.subr.mxu0 0.0
    %1540 = vmatpush1.msra.mxu0 %v178
    %1541 = vmatprep.subr.mxu0 0.0
    %1542 = vmatpush1.msra.mxu0 %v179
    %1543 = vmatprep.subr.mxu0 0.0
    %1544 = vmatpush1.msra.mxu0 %v180
    %1545 = vmatprep.subr.mxu0 0.0
    %1546 = vmatpush1.msra.mxu0 %v181
    %1547 = vmatprep.subr.mxu0 0.0
    %1548 = vmatpush1.msra.mxu0 %v182
    %1549 = vmatprep.subr.mxu0 0.0
    %1550 = vmatpush1.msra.mxu0 %v183
    %1551 = vmatprep.subr.mxu0 0.0
    %1552 = vmatpush1.msra.mxu0 %v184
    %1553 = vmatprep.subr.mxu0 0.0
    %1554 = vmatpush1.msra.mxu0 %v185
    %1555 = vmatprep.subr.mxu0 0.0
    %1556 = vmatpush1.msra.mxu0 %v186
    %1557 = vmatprep.subr.mxu0 0.0
    %1558 = vmatpush1.msra.mxu0 %v187
    %1559 = vmatprep.subr.mxu0 0.0
    %1560 = vmatpush1.msra.mxu0 %v188
    %1561 = vmatprep.subr.mxu0 0.0
    %1562 = vmatpush1.msra.mxu0 %v189
    %1563 = vmatprep.subr.mxu0 0.0
    %1564 = vmatpush1.msra.mxu0 %v190
    %1565 = vmatprep.subr.mxu0 0.0
    %1566 = vmatpush1.msra.mxu0 %v191
    %1567 = vmatprep.subr.mxu0 0.0
    %1568 = vmatpush1.msra.mxu0 %v192
    %1569 = vmatprep.subr.mxu0 0.0
    %1570 = vmatpush1.msra.mxu0 0.0
    %1571 = vmatprep.subr.mxu0 0.0
    %1572 = vmatpush1.msra.mxu0 0.0
    %1573 = vmatprep.subr.mxu0 0.0
    %1574 = vmatpush1.msra.mxu0 0.0
    %1575 = vmatprep.subr.mxu0 0.0
    %1576 = vmatpush1.msra.mxu0 0.0
    %1577 = vmatprep.subr.mxu0 0.0
    %1578 = vmatpush1.msra.mxu0 0.0
    %1579 = vmatprep.subr.mxu0 0.0
    %1580 = vmatpush1.msra.mxu0 0.0
    %1581 = vmatprep.subr.mxu0 0.0
    %1582 = vmatpush1.msra.mxu0 0.0
    %1583 = vmatprep.subr.mxu0 0.0
    %1584 = vmatpush1.msra.mxu0 0.0
    %1585 = vmatprep.subr.mxu0 0.0
    %1586 = vmatpush1.msra.mxu0 0.0
    %1587 = vmatprep.subr.mxu0 0.0
    %1588 = vmatpush1.msra.mxu0 0.0
    %1589 = vmatprep.subr.mxu0 0.0
    %1590 = vmatpush1.msra.mxu0 0.0
    %1591 = vmatprep.subr.mxu0 0.0
    %1592 = vmatpush1.msra.mxu0 0.0
    %1593 = vmatprep.subr.mxu0 0.0
    %1594 = vmatpush1.msra.mxu0 0.0
    %1595 = vmatprep.subr.mxu0 0.0
    %1596 = vmatpush1.msra.mxu0 0.0
    %1597 = vmatprep.subr.mxu0 0.0
    %1598 = vmatpush1.msra.mxu0 0.0
    %1599 = vmatprep.subr.mxu0 0.0
    %1600 = vmatpush1.msra.mxu0 0.0
    %1601 = vmatprep.mubr.f32.mxu0 0.0
    %1602 = vmatmul.mubr.f32.gmra.mrb[0].mxu0 %v1038
    %v1603 = vpop.f32.mrb[0].mxu0
    %v1604 = vadd.f32 0.0, %v1603
    %v1605 = vpop.f32.mrb[0].mxu0
    %1606 = vdwg.mxu0
    %v1607 = vld [vmem:[#allocation7] sm:$0xff]
    %v1608 = vld [vmem:[#allocation7 + $0x8] sm:$0xff]
    %v1609 = vld [vmem:[#allocation7 + $0x10] sm:$0xff]
    %v1610 = vld [vmem:[#allocation7 + $0x18] sm:$0xff]
    %v1611 = vld [vmem:[#allocation7 + $0x20] sm:$0xff]
    %v1612 = vld [vmem:[#allocation7 + $0x28] sm:$0xff]
    %v1613 = vld [vmem:[#allocation7 + $0x30] sm:$0xff]
    %v1614 = vld [vmem:[#allocation7 + $0x38] sm:$0xff]
    %v1615 = vld [vmem:[#allocation7 + $0x40] sm:$0xff]
    %v1616 = vld [vmem:[#allocation7 + $0x48] sm:$0xff]
    %v1617 = vld [vmem:[#allocation7 + $0x50] sm:$0xff]
    %v1618 = vld [vmem:[#allocation7 + $0x58] sm:$0xff]
    %v1619 = vld [vmem:[#allocation7 + $0x60] sm:$0xff]
    %v1620 = vld [vmem:[#allocation7 + $0x68] sm:$0xff]
    %v1621 = vld [vmem:[#allocation7 + $0x70] sm:$0xff]
    %v1622 = vld [vmem:[#allocation7 + $0x78] sm:$0xff]
    %v1631 = vrot.slane %v1184, 7
    %v1632 = vsel %vm945, %v1631, %v1114
    %v1633 = vrot.slane %v1254, 6
    %v1634 = vsel %vm948, %v1633, %v1632
    %v1635 = vrot.slane %v1324, 5
    %v1636 = vsel %vm951, %v1635, %v1634
    %v1637 = vrot.slane %v1394, 4
    %v1638 = vsel %vm954, %v1637, %v1636
    %v1639 = vrot.slane %v1464, 3
    %v1640 = vsel %vm957, %v1639, %v1638
    %v1641 = vrot.slane %v1534, 2
    %v1642 = vsel %vm960, %v1641, %v1640
    %v1643 = vrot.slane %v1604, 1
    %v1644 = vsel %vm963, %v1643, %v1642
    %1646 = vmatprep.subr.mxu0 0.0
    %1647 = vmatpush1.msra.mxu0 %v1607
    %1648 = vmatprep.subr.mxu0 0.0
    %1649 = vmatpush1.msra.mxu0 %v1608
    %1650 = vmatprep.subr.mxu0 0.0
    %1651 = vmatpush1.msra.mxu0 %v1609
    %1652 = vmatprep.subr.mxu0 0.0
    %1653 = vmatpush1.msra.mxu0 %v1610
    %1654 = vmatprep.subr.mxu0 0.0
    %1655 = vmatpush1.msra.mxu0 %v1611
    %1656 = vmatprep.subr.mxu0 0.0
    %1657 = vmatpush1.msra.mxu0 %v1612
    %1658 = vmatprep.subr.mxu0 0.0
    %1659 = vmatpush1.msra.mxu0 %v1613
    %1660 = vmatprep.subr.mxu0 0.0
    %1661 = vmatpush1.msra.mxu0 %v1614
    %1662 = vmatprep.subr.mxu0 0.0
    %1663 = vmatpush1.msra.mxu0 %v1615
    %1664 = vmatprep.subr.mxu0 0.0
    %1665 = vmatpush1.msra.mxu0 %v1616
    %1666 = vmatprep.subr.mxu0 0.0
    %1667 = vmatpush1.msra.mxu0 %v1617
    %1668 = vmatprep.subr.mxu0 0.0
    %1669 = vmatpush1.msra.mxu0 %v1618
    %1670 = vmatprep.subr.mxu0 0.0
    %1671 = vmatpush1.msra.mxu0 %v1619
    %1672 = vmatprep.subr.mxu0 0.0
    %1673 = vmatpush1.msra.mxu0 %v1620
    %1674 = vmatprep.subr.mxu0 0.0
    %1675 = vmatpush1.msra.mxu0 %v1621
    %1676 = vmatprep.subr.mxu0 0.0
    %1677 = vmatpush1.msra.mxu0 %v1622
    %1678 = vmatprep.subr.mxu0 0.0
    %1679 = vmatpush1.msra.mxu0 0.0
    %1680 = vmatprep.subr.mxu0 0.0
    %1681 = vmatpush1.msra.mxu0 0.0
    %1682 = vmatprep.subr.mxu0 0.0
    %1683 = vmatpush1.msra.mxu0 0.0
    %1684 = vmatprep.subr.mxu0 0.0
    %1685 = vmatpush1.msra.mxu0 0.0
    %1686 = vmatprep.subr.mxu0 0.0
    %1687 = vmatpush1.msra.mxu0 0.0
    %1688 = vmatprep.subr.mxu0 0.0
    %1689 = vmatpush1.msra.mxu0 0.0
    %1690 = vmatprep.subr.mxu0 0.0
    %1691 = vmatpush1.msra.mxu0 0.0
    %1692 = vmatprep.subr.mxu0 0.0
    %1693 = vmatpush1.msra.mxu0 0.0
    %1694 = vmatprep.subr.mxu0 0.0
    %1695 = vmatpush1.msra.mxu0 0.0
    %1696 = vmatprep.subr.mxu0 0.0
    %1697 = vmatpush1.msra.mxu0 0.0
    %1698 = vmatprep.subr.mxu0 0.0
    %1699 = vmatpush1.msra.mxu0 0.0
    %1700 = vmatprep.subr.mxu0 0.0
    %1701 = vmatpush1.msra.mxu0 0.0
    %1702 = vmatprep.subr.mxu0 0.0
    %1703 = vmatpush1.msra.mxu0 0.0
    %1704 = vmatprep.subr.mxu0 0.0
    %1705 = vmatpush1.msra.mxu0 0.0
    %1706 = vmatprep.subr.mxu0 0.0
    %1707 = vmatpush1.msra.mxu0 0.0
    %1708 = vmatprep.subr.mxu0 0.0
    %1709 = vmatpush1.msra.mxu0 0.0
    %1710 = vmatprep.mubr.f32.mxu0 0.0
    %1711 = vmatmul.mubr.f32.gmra.mrb[0].mxu0 %v1644
    %v1712 = vpop.f32.mrb[0].mxu0
    %v1713 = vadd.f32 0.0, %v1712
    %v1714 = vpop.f32.mrb[0].mxu0
    %1715 = vdwg.mxu0
    %v1716 = vadd.f32 %v295, %v1713
    %v1717 = vtanh.pop %v1716
    %1718 = vst [vmem:[#allocation8] sm:$0xff] %v1717
    %1719 = vst [vmem:[#allocation9] sm:$0xff] %v975
    // Predicated region
    $region34: #{tpu_custom_call.1} parent=1 // pred_check
      _
    $region35: #{tpu_custom_call.1} parent=1 // pred_check_branch
      %1721 = sbr.rel (0) target = $region37
    $region36: #{tpu_custom_call.1} parent=1 // pred_region
      %s1723 = ssub.s32 128, 128
      %1724 = vsyncadd [#allocation4], %s1723
      %s1726 = sshll.u32 [#allocation8], 4
      %s1727 = int_to_ptr.vmem [resolvable:$true] %s1726
      %1729 = dma.vmem_to_hbm [thread:$0]  %s1727, 128, %s5, [#allocation4]
    $region37: #{tpu_custom_call.1} parent=1 // pred_fallthru
      _
    // Predicated region
    $region38: #{tpu_custom_call.1} parent=1 // pred_check
      _
    $region39: #{tpu_custom_call.1} parent=1 // pred_check_branch
      %1731 = sbr.rel (0) target = $region41
    $region40: #{tpu_custom_call.1} parent=1 // pred_region
      %s1733 = ssub.s32 128, 128
      %1734 = vsyncadd [#allocation10], %s1733
      %s1736 = sshll.u32 [#allocation9], 4
      %s1737 = int_to_ptr.vmem [resolvable:$true] %s1736
      %1739 = dma.vmem_to_hbm [thread:$0]  %s1737, 128, %s6, [#allocation10]
    $region41: #{tpu_custom_call.1} parent=1 // pred_fallthru
      _
    // Predicated region
    $region42: #{tpu_custom_call.1} parent=1 // pred_check
      _
    $region43: #{tpu_custom_call.1} parent=1 // pred_check_branch
      %1741 = sbr.rel (0) target = $region45
    $region44: #{tpu_custom_call.1} parent=1 // pred_region
      %1742 = dma.done [#allocation4], 128
    $region45: #{tpu_custom_call.1} parent=1 // pred_fallthru
      _
    // Predicated region
    $region46: #{tpu_custom_call.1} parent=1 // pred_check
      _
    $region47: #{tpu_custom_call.1} parent=1 // pred_check_branch
      %1744 = sbr.rel (0) target = $region49
    $region48: #{tpu_custom_call.1} parent=1 // pred_region
      %1745 = dma.done [#allocation10], 128
    $region49: #{tpu_custom_call.1} parent=1 // pred_fallthru
      _
    %1746 = vsyncpa [#allocation3], 1
    %1747 = vsyncpa [#allocation6], 1
    %1748 = vsyncpa [#allocation4], 1
    %1749 = vsyncpa [#allocation10], 1

</llo_original>
